<compile_context>
chip_gen: v7x
topology: tpu7x:2x2x1
jax: 0.10.0
libtpu: 0.0.40
codegen_flags: <defaults>
</compile_context>

<pallas_src>
import functools

import jax
import jax.numpy as jnp
from jax import lax
from jax.experimental import pallas as pl
from jax.experimental.pallas import tpu as pltpu

EPS = 1e-5
PADL = 128  # lane padding on each side of the flattened H*W axis (aligned stores)


# --------------------------- fused decoder kernel -----------------------------
def _ada_decoder_kernel(style_ref, x_ref,
                        fc1w_ref, fc1b_ref, fc2w_ref, fc2b_ref,
                        fc3w_ref, fc3b_ref,
                        w1_ref, b1_ref, w2_ref, b2_ref,
                        w3_ref, b3_ref, w4_ref, b4_ref,
                        o_ref, xp_ref, *, H, W, C):
    HW = H * W

    # ---- style MLP, column-major: every vector is (features, 1) ----
    s = style_ref[0]                                               # (z, 1)
    h = jnp.dot(fc1w_ref[...], s, preferred_element_type=jnp.float32) + fc1b_ref[...]
    h = jnp.maximum(h, 0.0)
    h = jnp.dot(fc2w_ref[...], h, preferred_element_type=jnp.float32) + fc2b_ref[...]
    h = jnp.maximum(h, 0.0)
    ap = jnp.dot(fc3w_ref[...], h, preferred_element_type=jnp.float32) + fc3b_ref[...]
    ap = jnp.maximum(ap, 0.0)                                      # (6*C, 1)
    # assgin_adain_params order per AdaIN layer: (bias, weight); slices are
    # sublane-aligned (multiples of C = 8).
    adain_bias = (ap[0:C], ap[2 * C:3 * C], ap[4 * C:5 * C])
    adain_weight = (ap[C:2 * C], ap[3 * C:4 * C], ap[5 * C:6 * C])

    # ---- stage input into the lane-padded scratch (zeros = spatial padding) ----
    xp_ref[...] = jnp.zeros_like(xp_ref)
    xp_ref[:, PADL:PADL + HW] = x_ref[0]                           # aligned store

    # Hoisted per-lane column index and border masks (reused by every conv).
    j_idx = lax.broadcasted_iota(jnp.int32, (C, HW), 1) % W
    mask_l = j_idx >= 1          # kw == 0 taps valid (left image border)
    mask_r = j_idx <= W - 2      # kw == 2 taps valid (right image border)

    def conv3x3(w_ref, b_ref):
        """3x3 'SAME' conv, channel-major im2col: (Cout, 9C) @ (9C, HW)."""
        xt = xp_ref[...]                                           # (C, HW + 2*PADL)
        taps = []
        for kh in range(3):
            for kw in range(3):
                sft = (kh - 1) * W + (kw - 1)
                t = xt[:, PADL + sft:PADL + sft + HW]              # (C, HW)
                if kw == 0:
                    t = jnp.where(mask_l, t, 0.0)
                elif kw == 2:
                    t = jnp.where(mask_r, t, 0.0)
                taps.append(t)
        patches = jnp.concatenate(taps, axis=0)                    # (9C, HW) sublane concat
        y = jnp.dot(w_ref[...], patches, preferred_element_type=jnp.float32)
        return y + b_ref[...]                                      # (Cout, HW)

    def adain(y, w_col, b_col):
        """Instance norm over H*W (lanes), fused while the tile is live."""
        mean = jnp.mean(y, axis=1, keepdims=True)                  # (C, 1)
        d = y - mean
        var = jnp.mean(d * d, axis=1, keepdims=True)               # biased variance
        return d * (w_col * lax.rsqrt(var + EPS)) + b_col          # EUP rsqrt

    conv_params = ((w1_ref, b1_ref), (w2_ref, b2_ref), (w3_ref, b3_ref))
    for k, (w_ref, b_ref) in enumerate(conv_params):
        y = conv3x3(w_ref, b_ref)                                  # (C, HW)
        y = adain(y, adain_weight[k], adain_bias[k])
        xp_ref[:, PADL:PADL + HW] = y                              # next layer input

    y = conv3x3(w4_ref, b4_ref)                                    # (out_ch, HW)
    o_ref[0] = jnp.tanh(y)                                         # lane-dense store


# ------------------------------ python wrapper ---------------------------------
@jax.jit
def ada_decoder_forward(anatomy_nchw, style, p):
    B, Cin, H, W = anatomy_nchw.shape
    dim = p["conv1_w"].shape[3]
    out_ch = p["conv4_w"].shape[3]
    z_len = p["fc1_w"].shape[0]
    hidden = p["fc1_w"].shape[1]
    HW = H * W

    # NCHW -> (B, C, H*W): pure reshape, no transpose needed.
    x = anatomy_nchw.reshape(B, Cin, HW).astype(jnp.float32)
    style_col = style.reshape(B, z_len, 1).astype(jnp.float32)

    # conv weights HWIO (3,3,Cin,Cout) -> channel-major im2col (Cout, 9*Cin),
    # columns ordered (kh, kw, cin) to match the kernel's tap order.  Glue only.
    def conv_w(w):
        return jnp.transpose(w, (3, 0, 1, 2)).reshape(w.shape[3], 9 * w.shape[2])

    w1, w2, w3, w4 = (conv_w(p["conv1_w"]), conv_w(p["conv2_w"]),
                      conv_w(p["conv3_w"]), conv_w(p["conv4_w"]))
    fc1w, fc2w, fc3w = p["fc1_w"].T, p["fc2_w"].T, p["fc3_w"].T    # (out, in)

    kern = functools.partial(_ada_decoder_kernel, H=H, W=W, C=dim)
    rep = lambda b: (0, 0)

    out_flat = pl.pallas_call(
        kern,
        out_shape=jax.ShapeDtypeStruct((B, out_ch, HW), jnp.float32),
        grid=(B,),
        in_specs=[
            pl.BlockSpec((1, z_len, 1), lambda b: (b, 0, 0)),      # style column
            pl.BlockSpec((1, dim, HW), lambda b: (b, 0, 0)),       # anatomy (C, HW)
            pl.BlockSpec((hidden, z_len), rep),                    # fc1_w^T
            pl.BlockSpec((hidden, 1), rep),                        # fc1_b
            pl.BlockSpec((hidden, hidden), rep),                   # fc2_w^T
            pl.BlockSpec((hidden, 1), rep),                        # fc2_b
            pl.BlockSpec((6 * dim, hidden), rep),                  # fc3_w^T
            pl.BlockSpec((6 * dim, 1), rep),                       # fc3_b
            pl.BlockSpec((dim, 9 * dim), rep),                     # conv1 w
            pl.BlockSpec((dim, 1), rep),                           # conv1 b
            pl.BlockSpec((dim, 9 * dim), rep),                     # conv2 w
            pl.BlockSpec((dim, 1), rep),                           # conv2 b
            pl.BlockSpec((dim, 9 * dim), rep),                     # conv3 w
            pl.BlockSpec((dim, 1), rep),                           # conv3 b
            pl.BlockSpec((out_ch, 9 * dim), rep),                  # conv4 w
            pl.BlockSpec((out_ch, 1), rep),                        # conv4 b
        ],
        out_specs=pl.BlockSpec((1, out_ch, HW), lambda b: (b, 0, 0)),
        scratch_shapes=[pltpu.VMEM((dim, HW + 2 * PADL), jnp.float32)],
        compiler_params=pltpu.CompilerParams(
            dimension_semantics=("parallel",)),
    )(style_col, x,
      fc1w, p["fc1_b"].reshape(hidden, 1),
      fc2w, p["fc2_b"].reshape(hidden, 1),
      fc3w, p["fc3_b"].reshape(6 * dim, 1),
      w1, p["conv1_b"].reshape(dim, 1),
      w2, p["conv2_b"].reshape(dim, 1),
      w3, p["conv3_b"].reshape(dim, 1),
      w4, p["conv4_b"].reshape(out_ch, 1))

    return out_flat.reshape(B, out_ch, H, W)                       # already NCHW


# ------------------------------ pure-JAX reference ------------------------------
def _ref_forward(anatomy_nchw, style, p):
    dim = p["conv1_w"].shape[3]
    h = jnp.maximum(style @ p["fc1_w"] + p["fc1_b"], 0.0)
    h = jnp.maximum(h @ p["fc2_w"] + p["fc2_b"], 0.0)
    ap = jnp.maximum(h @ p["fc3_w"] + p["fc3_b"], 0.0)

    def conv_ref(x, w, b):
        y = lax.conv_general_dilated(x, w, (1, 1), "SAME",
                                     dimension_numbers=("NHWC", "HWIO", "NHWC"))
        return y + b[None, None, None, :]

    def adain_ref(x, w, b):
        mean = jnp.mean(x, axis=(1, 2), keepdims=True)
        var = jnp.mean(jnp.square(x - mean), axis=(1, 2), keepdims=True)
        return (x - mean) / jnp.sqrt(var + EPS) * w[:, None, None, :] + b[:, None, None, :]

    x = jnp.transpose(anatomy_nchw, (0, 2, 3, 1))
    out = conv_ref(x, p["conv1_w"], p["conv1_b"])
    out = adain_ref(out, ap[:, dim:2 * dim], ap[:, :dim])
    out = conv_ref(out, p["conv2_w"], p["conv2_b"])
    out = adain_ref(out, ap[:, 3 * dim:4 * dim], ap[:, 2 * dim:3 * dim])
    out = conv_ref(out, p["conv3_w"], p["conv3_b"])
    out = adain_ref(out, ap[:, 5 * dim:6 * dim], ap[:, 4 * dim:5 * dim])
    out = jnp.tanh(conv_ref(out, p["conv4_w"], p["conv4_b"]))
    return jnp.transpose(out, (0, 3, 1, 2))


# ------------------------------------ main ---------------------------------------
if __name__ == "__main__":
    B, dim, out_channel, z_length, H, W, hidden = 2, 8, 3, 8, 16, 16, 256
    n_adain = 6 * dim  # 2 params per feature * dim features * 3 AdaIN layers

    key = jax.random.PRNGKey(0)
    ks = jax.random.split(key, 16)

    def rn(k, shape, scale):
        return (scale * jax.random.normal(k, shape)).astype(jnp.float32)

    params = {
        # conv weights stored HWIO (kh, kw, Cin, Cout)
        "conv1_w": rn(ks[0], (3, 3, dim, dim), 0.2), "conv1_b": rn(ks[1], (dim,), 0.1),
        "conv2_w": rn(ks[2], (3, 3, dim, dim), 0.2), "conv2_b": rn(ks[3], (dim,), 0.1),
        "conv3_w": rn(ks[4], (3, 3, dim, dim), 0.2), "conv3_b": rn(ks[5], (dim,), 0.1),
        "conv4_w": rn(ks[6], (3, 3, dim, out_channel), 0.2), "conv4_b": rn(ks[7], (out_channel,), 0.1),
        # MLP weights stored (in, out)
        "fc1_w": rn(ks[8], (z_length, hidden), 0.1), "fc1_b": rn(ks[9], (hidden,), 0.1),
        "fc2_w": rn(ks[10], (hidden, hidden), 0.05), "fc2_b": rn(ks[11], (hidden,), 0.1),
        "fc3_w": rn(ks[12], (hidden, n_adain), 0.05), "fc3_b": rn(ks[13], (n_adain,), 0.1),
    }

    anatomy = rn(ks[14], (B, dim, H, W), 1.0)   # NCHW, like the PyTorch module
    style = rn(ks[15], (B, z_length), 1.0)

    out = ada_decoder_forward(anatomy, style, params)
    out = jax.block_until_ready(out)

    ref = _ref_forward(anatomy, style, params)
    assert out.shape == (B, out_channel, H, W)
    assert jnp.allclose(out, ref, atol=1e-4, rtol=1e-4), float(jnp.max(jnp.abs(out - ref)))

    print("KERNEL_OK")
</pallas_src>

<mosaic_0001>
module attributes {stable_mosaic.version = 11 : i64} {
  func.func @_ada_decoder_kernel(%arg0: i32, %arg1: memref<1x8x1xf32, #tpu.memory_space<vmem>>, %arg2: memref<1x8x256xf32, #tpu.memory_space<vmem>>, %arg3: memref<256x8xf32, #tpu.memory_space<vmem>>, %arg4: memref<256x1xf32, #tpu.memory_space<vmem>>, %arg5: memref<256x256xf32, #tpu.memory_space<vmem>>, %arg6: memref<256x1xf32, #tpu.memory_space<vmem>>, %arg7: memref<48x256xf32, #tpu.memory_space<vmem>>, %arg8: memref<48x1xf32, #tpu.memory_space<vmem>>, %arg9: memref<8x72xf32, #tpu.memory_space<vmem>>, %arg10: memref<8x1xf32, #tpu.memory_space<vmem>>, %arg11: memref<8x72xf32, #tpu.memory_space<vmem>>, %arg12: memref<8x1xf32, #tpu.memory_space<vmem>>, %arg13: memref<8x72xf32, #tpu.memory_space<vmem>>, %arg14: memref<8x1xf32, #tpu.memory_space<vmem>>, %arg15: memref<3x72xf32, #tpu.memory_space<vmem>>, %arg16: memref<3x1xf32, #tpu.memory_space<vmem>>, %arg17: memref<1x3x256xf32, #tpu.memory_space<vmem>>, %arg18: memref<8x512xf32, #tpu.memory_space<vmem>>) attributes {dimension_semantics = [#tpu.dimension_semantics<parallel>], iteration_bounds = array<i64: 2>, scalar_prefetch = 0 : i64, scratch_operands = 1 : i64, tpu.core_type = #tpu.core_type<tc>, window_params = [{transform_indices = @transform_0, window_bounds = array<i64: 1, 8, 1>}, {transform_indices = @transform_1, window_bounds = array<i64: 1, 8, 256>}, {pipeline_mode = #tpu.pipeline_mode<synchronous>, transform_indices = @transform_2, window_bounds = array<i64: 256, 8>}, {pipeline_mode = #tpu.pipeline_mode<synchronous>, transform_indices = @transform_3, window_bounds = array<i64: 256, 1>}, {pipeline_mode = #tpu.pipeline_mode<synchronous>, transform_indices = @transform_4, window_bounds = array<i64: 256, 256>}, {pipeline_mode = #tpu.pipeline_mode<synchronous>, transform_indices = @transform_5, window_bounds = array<i64: 256, 1>}, {pipeline_mode = #tpu.pipeline_mode<synchronous>, transform_indices = @transform_6, window_bounds = array<i64: 48, 256>}, {pipeline_mode = #tpu.pipeline_mode<synchronous>, transform_indices = @transform_7, window_bounds = array<i64: 48, 1>}, {pipeline_mode = #tpu.pipeline_mode<synchronous>, transform_indices = @transform_8, window_bounds = array<i64: 8, 72>}, {pipeline_mode = #tpu.pipeline_mode<synchronous>, transform_indices = @transform_9, window_bounds = array<i64: 8, 1>}, {pipeline_mode = #tpu.pipeline_mode<synchronous>, transform_indices = @transform_10, window_bounds = array<i64: 8, 72>}, {pipeline_mode = #tpu.pipeline_mode<synchronous>, transform_indices = @transform_11, window_bounds = array<i64: 8, 1>}, {pipeline_mode = #tpu.pipeline_mode<synchronous>, transform_indices = @transform_12, window_bounds = array<i64: 8, 72>}, {pipeline_mode = #tpu.pipeline_mode<synchronous>, transform_indices = @transform_13, window_bounds = array<i64: 8, 1>}, {pipeline_mode = #tpu.pipeline_mode<synchronous>, transform_indices = @transform_14, window_bounds = array<i64: 3, 72>}, {pipeline_mode = #tpu.pipeline_mode<synchronous>, transform_indices = @transform_15, window_bounds = array<i64: 3, 1>}, {transform_indices = @transform_16, window_bounds = array<i64: 1, 3, 256>}]} {
    %c0 = arith.constant 0 : index
    %c0_0 = arith.constant 0 : index
    %c0_1 = arith.constant 0 : index
    %0 = vector.load %arg1[%c0, %c0_0, %c0_1] : memref<1x8x1xf32, #tpu.memory_space<vmem>>, vector<1x8x1xf32>
    %1 = vector.shape_cast %0 : vector<1x8x1xf32> to vector<8x1xf32>
    %c0_2 = arith.constant 0 : index
    %c0_3 = arith.constant 0 : index
    %2 = vector.load %arg3[%c0_2, %c0_3] : memref<256x8xf32, #tpu.memory_space<vmem>>, vector<256x8xf32>
    %cst = arith.constant dense<0.000000e+00> : vector<256x1xf32>
    %3 = tpu.matmul %2, %1, %cst {dimension_numbers = #tpu.dot_dimension_numbers<[1], [0], [0], [1], [0, 0, 1, 1], [], []>} : vector<256x8xf32>, vector<8x1xf32>, vector<256x1xf32> -> vector<256x1xf32>
    %c0_4 = arith.constant 0 : index
    %c0_5 = arith.constant 0 : index
    %4 = vector.load %arg4[%c0_4, %c0_5] : memref<256x1xf32, #tpu.memory_space<vmem>>, vector<256x1xf32>
    %5 = arith.addf %3, %4 : vector<256x1xf32>
    %cst_6 = arith.constant 0.000000e+00 : f32
    %6 = vector.broadcast %cst_6 : f32 to vector<256x1xf32>
    %7 = arith.maximumf %5, %6 : vector<256x1xf32>
    %c0_7 = arith.constant 0 : index
    %c0_8 = arith.constant 0 : index
    %8 = vector.load %arg5[%c0_7, %c0_8] : memref<256x256xf32, #tpu.memory_space<vmem>>, vector<256x256xf32>
    %cst_9 = arith.constant dense<0.000000e+00> : vector<256x1xf32>
    %9 = tpu.matmul %8, %7, %cst_9 {dimension_numbers = #tpu.dot_dimension_numbers<[1], [0], [0], [1], [0, 0, 1, 1], [], []>} : vector<256x256xf32>, vector<256x1xf32>, vector<256x1xf32> -> vector<256x1xf32>
    %c0_10 = arith.constant 0 : index
    %c0_11 = arith.constant 0 : index
    %10 = vector.load %arg6[%c0_10, %c0_11] : memref<256x1xf32, #tpu.memory_space<vmem>>, vector<256x1xf32>
    %11 = arith.addf %9, %10 : vector<256x1xf32>
    %cst_12 = arith.constant 0.000000e+00 : f32
    %12 = vector.broadcast %cst_12 : f32 to vector<256x1xf32>
    %13 = arith.maximumf %11, %12 : vector<256x1xf32>
    %c0_13 = arith.constant 0 : index
    %c0_14 = arith.constant 0 : index
    %14 = vector.load %arg7[%c0_13, %c0_14] : memref<48x256xf32, #tpu.memory_space<vmem>>, vector<48x256xf32>
    %cst_15 = arith.constant dense<0.000000e+00> : vector<48x1xf32>
    %15 = tpu.matmul %14, %13, %cst_15 {dimension_numbers = #tpu.dot_dimension_numbers<[1], [0], [0], [1], [0, 0, 1, 1], [], []>} : vector<48x256xf32>, vector<256x1xf32>, vector<48x1xf32> -> vector<48x1xf32>
    %c0_16 = arith.constant 0 : index
    %c0_17 = arith.constant 0 : index
    %16 = vector.load %arg8[%c0_16, %c0_17] : memref<48x1xf32, #tpu.memory_space<vmem>>, vector<48x1xf32>
    %17 = arith.addf %15, %16 : vector<48x1xf32>
    %cst_18 = arith.constant 0.000000e+00 : f32
    %18 = vector.broadcast %cst_18 : f32 to vector<48x1xf32>
    %19 = arith.maximumf %17, %18 : vector<48x1xf32>
    %20 = vector.extract_strided_slice %19 {offsets = [0, 0], sizes = [8, 1], strides = [1, 1]} : vector<48x1xf32> to vector<8x1xf32>
    %21 = vector.extract_strided_slice %19 {offsets = [16, 0], sizes = [8, 1], strides = [1, 1]} : vector<48x1xf32> to vector<8x1xf32>
    %22 = vector.extract_strided_slice %19 {offsets = [32, 0], sizes = [8, 1], strides = [1, 1]} : vector<48x1xf32> to vector<8x1xf32>
    %23 = vector.extract_strided_slice %19 {offsets = [8, 0], sizes = [8, 1], strides = [1, 1]} : vector<48x1xf32> to vector<8x1xf32>
    %24 = vector.extract_strided_slice %19 {offsets = [24, 0], sizes = [8, 1], strides = [1, 1]} : vector<48x1xf32> to vector<8x1xf32>
    %25 = vector.extract_strided_slice %19 {offsets = [40, 0], sizes = [8, 1], strides = [1, 1]} : vector<48x1xf32> to vector<8x1xf32>
    %cst_19 = arith.constant 0.000000e+00 : f32
    %26 = vector.broadcast %cst_19 : f32 to vector<8x512xf32>
    %c0_20 = arith.constant 0 : index
    %c0_21 = arith.constant 0 : index
    %27 = vector.load %arg18[%c0_20, %c0_21] : memref<8x512xf32, #tpu.memory_space<vmem>>, vector<8x512xf32>
    tpu.vector_store %arg18[%c0_20, %c0_21], %26 {strides = array<i32>} : memref<8x512xf32, #tpu.memory_space<vmem>>, vector<8x512xf32>,
    %c0_22 = arith.constant 0 : index
    %c0_23 = arith.constant 0 : index
    %c0_24 = arith.constant 0 : index
    %28 = vector.load %arg2[%c0_22, %c0_23, %c0_24] : memref<1x8x256xf32, #tpu.memory_space<vmem>>, vector<1x8x256xf32>
    %29 = vector.shape_cast %28 : vector<1x8x256xf32> to vector<8x256xf32>
    %c0_25 = arith.constant 0 : index
    %c128 = arith.constant 128 : index
    %30 = vector.load %arg18[%c0_25, %c128] : memref<8x512xf32, #tpu.memory_space<vmem>>, vector<8x256xf32>
    tpu.vector_store %arg18[%c0_25, %c128], %29 {strides = array<i32>} : memref<8x512xf32, #tpu.memory_space<vmem>>, vector<8x256xf32>,
    %31 = tpu.iota {dimensions = array<i32: 1>} : vector<8x256xi32>
    %c16_i32 = arith.constant 16 : i32
    %c0_i32 = arith.constant 0 : i32
    %32 = arith.cmpi eq, %c16_i32, %c0_i32 : i32
    %c1_i32 = arith.constant 1 : i32
    %33 = arith.select %32, %c1_i32, %c16_i32 : i32
    %34 = vector.broadcast %33 : i32 to vector<8x256xi32>
    %35 = arith.remsi %31, %34 : vector<8x256xi32>
    %c0_i32_26 = arith.constant 0 : i32
    %36 = vector.broadcast %c0_i32_26 : i32 to vector<8x256xi32>
    %37 = arith.cmpi ne, %35, %36 : vector<8x256xi32>
    %c0_i32_27 = arith.constant 0 : i32
    %38 = vector.broadcast %c0_i32_27 : i32 to vector<8x256xi32>
    %39 = arith.cmpi slt, %35, %38 : vector<8x256xi32>
    %c0_i32_28 = arith.constant 0 : i32
    %40 = arith.cmpi slt, %33, %c0_i32_28 : i32
    %41 = vector.broadcast %40 : i1 to vector<8x256xi1>
    %42 = vector.broadcast %41 : vector<8x256xi1> to vector<8x256xi1>
    %43 = arith.xori %39, %42 : vector<8x256xi1>
    %44 = arith.andi %43, %37 : vector<8x256xi1>
    %45 = vector.broadcast %33 : i32 to vector<8x256xi32>
    %46 = arith.addi %35, %45 : vector<8x256xi32>
    %47 = arith.select %44, %46, %35 : vector<8x256xi1>, vector<8x256xi32>
    %c1_i32_29 = arith.constant 1 : i32
    %48 = vector.broadcast %c1_i32_29 : i32 to vector<8x256xi32>
    %49 = arith.cmpi sge, %47, %48 : vector<8x256xi32>
    %c14_i32 = arith.constant 14 : i32
    %50 = vector.broadcast %c14_i32 : i32 to vector<8x256xi32>
    %51 = arith.cmpi sle, %47, %50 : vector<8x256xi32>
    %c0_30 = arith.constant 0 : index
    %c0_31 = arith.constant 0 : index
    %52 = vector.load %arg18[%c0_30, %c0_31] : memref<8x512xf32, #tpu.memory_space<vmem>>, vector<8x512xf32>
    %53 = vector.extract_strided_slice %52 {offsets = [0, 111], sizes = [8, 256], strides = [1, 1]} : vector<8x512xf32> to vector<8x256xf32>
    %cst_32 = arith.constant 0.000000e+00 : f32
    %54 = vector.broadcast %cst_32 : f32 to vector<8x256xf32>
    %55 = arith.select %49, %53, %54 : vector<8x256xi1>, vector<8x256xf32>
    %56 = vector.extract_strided_slice %52 {offsets = [0, 112], sizes = [8, 256], strides = [1, 1]} : vector<8x512xf32> to vector<8x256xf32>
    %57 = vector.extract_strided_slice %52 {offsets = [0, 113], sizes = [8, 256], strides = [1, 1]} : vector<8x512xf32> to vector<8x256xf32>
    %cst_33 = arith.constant 0.000000e+00 : f32
    %58 = vector.broadcast %cst_33 : f32 to vector<8x256xf32>
    %59 = arith.select %51, %57, %58 : vector<8x256xi1>, vector<8x256xf32>
    %60 = vector.extract_strided_slice %52 {offsets = [0, 127], sizes = [8, 256], strides = [1, 1]} : vector<8x512xf32> to vector<8x256xf32>
    %cst_34 = arith.constant 0.000000e+00 : f32
    %61 = vector.broadcast %cst_34 : f32 to vector<8x256xf32>
    %62 = arith.select %49, %60, %61 : vector<8x256xi1>, vector<8x256xf32>
    %63 = vector.extract_strided_slice %52 {offsets = [0, 128], sizes = [8, 256], strides = [1, 1]} : vector<8x512xf32> to vector<8x256xf32>
    %64 = vector.extract_strided_slice %52 {offsets = [0, 129], sizes = [8, 256], strides = [1, 1]} : vector<8x512xf32> to vector<8x256xf32>
    %cst_35 = arith.constant 0.000000e+00 : f32
    %65 = vector.broadcast %cst_35 : f32 to vector<8x256xf32>
    %66 = arith.select %51, %64, %65 : vector<8x256xi1>, vector<8x256xf32>
    %67 = vector.extract_strided_slice %52 {offsets = [0, 143], sizes = [8, 256], strides = [1, 1]} : vector<8x512xf32> to vector<8x256xf32>
    %cst_36 = arith.constant 0.000000e+00 : f32
    %68 = vector.broadcast %cst_36 : f32 to vector<8x256xf32>
    %69 = arith.select %49, %67, %68 : vector<8x256xi1>, vector<8x256xf32>
    %70 = vector.extract_strided_slice %52 {offsets = [0, 144], sizes = [8, 256], strides = [1, 1]} : vector<8x512xf32> to vector<8x256xf32>
    %71 = vector.extract_strided_slice %52 {offsets = [0, 145], sizes = [8, 256], strides = [1, 1]} : vector<8x512xf32> to vector<8x256xf32>
    %cst_37 = arith.constant 0.000000e+00 : f32
    %72 = vector.broadcast %cst_37 : f32 to vector<8x256xf32>
    %73 = arith.select %51, %71, %72 : vector<8x256xi1>, vector<8x256xf32>
    %74 = tpu.concatenate %55, %56, %59, %62, %63, %66, %69, %70, %73 in 0 : vector<8x256xf32>, vector<8x256xf32>, vector<8x256xf32>, vector<8x256xf32>, vector<8x256xf32>, vector<8x256xf32>, vector<8x256xf32>, vector<8x256xf32>, vector<8x256xf32> -> vector<72x256xf32>
    %c0_38 = arith.constant 0 : index
    %c0_39 = arith.constant 0 : index
    %75 = vector.load %arg9[%c0_38, %c0_39] : memref<8x72xf32, #tpu.memory_space<vmem>>, vector<8x72xf32>
    %cst_40 = arith.constant dense<0.000000e+00> : vector<8x256xf32>
    %76 = tpu.matmul %75, %74, %cst_40 {dimension_numbers = #tpu.dot_dimension_numbers<[1], [0], [0], [1], [0, 0, 1, 1], [], []>} : vector<8x72xf32>, vector<72x256xf32>, vector<8x256xf32> -> vector<8x256xf32>
    %c0_41 = arith.constant 0 : index
    %c0_42 = arith.constant 0 : index
    %77 = vector.load %arg10[%c0_41, %c0_42] : memref<8x1xf32, #tpu.memory_space<vmem>>, vector<8x1xf32>
    %78 = vector.broadcast %77 : vector<8x1xf32> to vector<8x256xf32>
    %79 = arith.addf %76, %78 : vector<8x256xf32>
    %cst_43 = arith.constant dense<0.000000e+00> : vector<8xf32>
    %80 = vector.multi_reduction <add>, %79, %cst_43 [1] : vector<8x256xf32> to vector<8xf32>
    %81 = vector.shape_cast %80 : vector<8xf32> to vector<8x1xf32>
    %cst_44 = arith.constant 2.560000e+02 : f32
    %82 = vector.broadcast %cst_44 : f32 to vector<8x1xf32>
    %83 = arith.divf %81, %82 : vector<8x1xf32>
    %84 = vector.broadcast %83 : vector<8x1xf32> to vector<8x256xf32>
    %85 = arith.subf %79, %84 : vector<8x256xf32>
    %86 = arith.mulf %85, %85 : vector<8x256xf32>
    %cst_45 = arith.constant dense<0.000000e+00> : vector<8xf32>
    %87 = vector.multi_reduction <add>, %86, %cst_45 [1] : vector<8x256xf32> to vector<8xf32>
    %88 = vector.shape_cast %87 : vector<8xf32> to vector<8x1xf32>
    %cst_46 = arith.constant 2.560000e+02 : f32
    %89 = vector.broadcast %cst_46 : f32 to vector<8x1xf32>
    %90 = arith.divf %88, %89 : vector<8x1xf32>
    %cst_47 = arith.constant 9.99999974E-6 : f32
    %91 = vector.broadcast %cst_47 : f32 to vector<8x1xf32>
    %92 = arith.addf %90, %91 : vector<8x1xf32>
    %93 = math.rsqrt %92 : vector<8x1xf32>
    %94 = arith.mulf %23, %93 : vector<8x1xf32>
    %95 = vector.broadcast %94 : vector<8x1xf32> to vector<8x256xf32>
    %96 = arith.mulf %85, %95 : vector<8x256xf32>
    %97 = vector.broadcast %20 : vector<8x1xf32> to vector<8x256xf32>
    %98 = arith.addf %96, %97 : vector<8x256xf32>
    %c0_48 = arith.constant 0 : index
    %c128_49 = arith.constant 128 : index
    %99 = vector.load %arg18[%c0_48, %c128_49] : memref<8x512xf32, #tpu.memory_space<vmem>>, vector<8x256xf32>
    tpu.vector_store %arg18[%c0_48, %c128_49], %98 {strides = array<i32>} : memref<8x512xf32, #tpu.memory_space<vmem>>, vector<8x256xf32>,
    %c0_50 = arith.constant 0 : index
    %c0_51 = arith.constant 0 : index
    %100 = vector.load %arg18[%c0_50, %c0_51] : memref<8x512xf32, #tpu.memory_space<vmem>>, vector<8x512xf32>
    %101 = vector.extract_strided_slice %100 {offsets = [0, 111], sizes = [8, 256], strides = [1, 1]} : vector<8x512xf32> to vector<8x256xf32>
    %cst_52 = arith.constant 0.000000e+00 : f32
    %102 = vector.broadcast %cst_52 : f32 to vector<8x256xf32>
    %103 = arith.select %49, %101, %102 : vector<8x256xi1>, vector<8x256xf32>
    %104 = vector.extract_strided_slice %100 {offsets = [0, 112], sizes = [8, 256], strides = [1, 1]} : vector<8x512xf32> to vector<8x256xf32>
    %105 = vector.extract_strided_slice %100 {offsets = [0, 113], sizes = [8, 256], strides = [1, 1]} : vector<8x512xf32> to vector<8x256xf32>
    %cst_53 = arith.constant 0.000000e+00 : f32
    %106 = vector.broadcast %cst_53 : f32 to vector<8x256xf32>
    %107 = arith.select %51, %105, %106 : vector<8x256xi1>, vector<8x256xf32>
    %108 = vector.extract_strided_slice %100 {offsets = [0, 127], sizes = [8, 256], strides = [1, 1]} : vector<8x512xf32> to vector<8x256xf32>
    %cst_54 = arith.constant 0.000000e+00 : f32
    %109 = vector.broadcast %cst_54 : f32 to vector<8x256xf32>
    %110 = arith.select %49, %108, %109 : vector<8x256xi1>, vector<8x256xf32>
    %111 = vector.extract_strided_slice %100 {offsets = [0, 128], sizes = [8, 256], strides = [1, 1]} : vector<8x512xf32> to vector<8x256xf32>
    %112 = vector.extract_strided_slice %100 {offsets = [0, 129], sizes = [8, 256], strides = [1, 1]} : vector<8x512xf32> to vector<8x256xf32>
    %cst_55 = arith.constant 0.000000e+00 : f32
    %113 = vector.broadcast %cst_55 : f32 to vector<8x256xf32>
    %114 = arith.select %51, %112, %113 : vector<8x256xi1>, vector<8x256xf32>
    %115 = vector.extract_strided_slice %100 {offsets = [0, 143], sizes = [8, 256], strides = [1, 1]} : vector<8x512xf32> to vector<8x256xf32>
    %cst_56 = arith.constant 0.000000e+00 : f32
    %116 = vector.broadcast %cst_56 : f32 to vector<8x256xf32>
    %117 = arith.select %49, %115, %116 : vector<8x256xi1>, vector<8x256xf32>
    %118 = vector.extract_strided_slice %100 {offsets = [0, 144], sizes = [8, 256], strides = [1, 1]} : vector<8x512xf32> to vector<8x256xf32>
    %119 = vector.extract_strided_slice %100 {offsets = [0, 145], sizes = [8, 256], strides = [1, 1]} : vector<8x512xf32> to vector<8x256xf32>
    %cst_57 = arith.constant 0.000000e+00 : f32
    %120 = vector.broadcast %cst_57 : f32 to vector<8x256xf32>
    %121 = arith.select %51, %119, %120 : vector<8x256xi1>, vector<8x256xf32>
    %122 = tpu.concatenate %103, %104, %107, %110, %111, %114, %117, %118, %121 in 0 : vector<8x256xf32>, vector<8x256xf32>, vector<8x256xf32>, vector<8x256xf32>, vector<8x256xf32>, vector<8x256xf32>, vector<8x256xf32>, vector<8x256xf32>, vector<8x256xf32> -> vector<72x256xf32>
    %c0_58 = arith.constant 0 : index
    %c0_59 = arith.constant 0 : index
    %123 = vector.load %arg11[%c0_58, %c0_59] : memref<8x72xf32, #tpu.memory_space<vmem>>, vector<8x72xf32>
    %cst_60 = arith.constant dense<0.000000e+00> : vector<8x256xf32>
    %124 = tpu.matmul %123, %122, %cst_60 {dimension_numbers = #tpu.dot_dimension_numbers<[1], [0], [0], [1], [0, 0, 1, 1], [], []>} : vector<8x72xf32>, vector<72x256xf32>, vector<8x256xf32> -> vector<8x256xf32>
    %c0_61 = arith.constant 0 : index
    %c0_62 = arith.constant 0 : index
    %125 = vector.load %arg12[%c0_61, %c0_62] : memref<8x1xf32, #tpu.memory_space<vmem>>, vector<8x1xf32>
    %126 = vector.broadcast %125 : vector<8x1xf32> to vector<8x256xf32>
    %127 = arith.addf %124, %126 : vector<8x256xf32>
    %cst_63 = arith.constant dense<0.000000e+00> : vector<8xf32>
    %128 = vector.multi_reduction <add>, %127, %cst_63 [1] : vector<8x256xf32> to vector<8xf32>
    %129 = vector.shape_cast %128 : vector<8xf32> to vector<8x1xf32>
    %cst_64 = arith.constant 2.560000e+02 : f32
    %130 = vector.broadcast %cst_64 : f32 to vector<8x1xf32>
    %131 = arith.divf %129, %130 : vector<8x1xf32>
    %132 = vector.broadcast %131 : vector<8x1xf32> to vector<8x256xf32>
    %133 = arith.subf %127, %132 : vector<8x256xf32>
    %134 = arith.mulf %133, %133 : vector<8x256xf32>
    %cst_65 = arith.constant dense<0.000000e+00> : vector<8xf32>
    %135 = vector.multi_reduction <add>, %134, %cst_65 [1] : vector<8x256xf32> to vector<8xf32>
    %136 = vector.shape_cast %135 : vector<8xf32> to vector<8x1xf32>
    %cst_66 = arith.constant 2.560000e+02 : f32
    %137 = vector.broadcast %cst_66 : f32 to vector<8x1xf32>
    %138 = arith.divf %136, %137 : vector<8x1xf32>
    %cst_67 = arith.constant 9.99999974E-6 : f32
    %139 = vector.broadcast %cst_67 : f32 to vector<8x1xf32>
    %140 = arith.addf %138, %139 : vector<8x1xf32>
    %141 = math.rsqrt %140 : vector<8x1xf32>
    %142 = arith.mulf %24, %141 : vector<8x1xf32>
    %143 = vector.broadcast %142 : vector<8x1xf32> to vector<8x256xf32>
    %144 = arith.mulf %133, %143 : vector<8x256xf32>
    %145 = vector.broadcast %21 : vector<8x1xf32> to vector<8x256xf32>
    %146 = arith.addf %144, %145 : vector<8x256xf32>
    %c0_68 = arith.constant 0 : index
    %c128_69 = arith.constant 128 : index
    %147 = vector.load %arg18[%c0_68, %c128_69] : memref<8x512xf32, #tpu.memory_space<vmem>>, vector<8x256xf32>
    tpu.vector_store %arg18[%c0_68, %c128_69], %146 {strides = array<i32>} : memref<8x512xf32, #tpu.memory_space<vmem>>, vector<8x256xf32>,
    %c0_70 = arith.constant 0 : index
    %c0_71 = arith.constant 0 : index
    %148 = vector.load %arg18[%c0_70, %c0_71] : memref<8x512xf32, #tpu.memory_space<vmem>>, vector<8x512xf32>
    %149 = vector.extract_strided_slice %148 {offsets = [0, 111], sizes = [8, 256], strides = [1, 1]} : vector<8x512xf32> to vector<8x256xf32>
    %cst_72 = arith.constant 0.000000e+00 : f32
    %150 = vector.broadcast %cst_72 : f32 to vector<8x256xf32>
    %151 = arith.select %49, %149, %150 : vector<8x256xi1>, vector<8x256xf32>
    %152 = vector.extract_strided_slice %148 {offsets = [0, 112], sizes = [8, 256], strides = [1, 1]} : vector<8x512xf32> to vector<8x256xf32>
    %153 = vector.extract_strided_slice %148 {offsets = [0, 113], sizes = [8, 256], strides = [1, 1]} : vector<8x512xf32> to vector<8x256xf32>
    %cst_73 = arith.constant 0.000000e+00 : f32
    %154 = vector.broadcast %cst_73 : f32 to vector<8x256xf32>
    %155 = arith.select %51, %153, %154 : vector<8x256xi1>, vector<8x256xf32>
    %156 = vector.extract_strided_slice %148 {offsets = [0, 127], sizes = [8, 256], strides = [1, 1]} : vector<8x512xf32> to vector<8x256xf32>
    %cst_74 = arith.constant 0.000000e+00 : f32
    %157 = vector.broadcast %cst_74 : f32 to vector<8x256xf32>
    %158 = arith.select %49, %156, %157 : vector<8x256xi1>, vector<8x256xf32>
    %159 = vector.extract_strided_slice %148 {offsets = [0, 128], sizes = [8, 256], strides = [1, 1]} : vector<8x512xf32> to vector<8x256xf32>
    %160 = vector.extract_strided_slice %148 {offsets = [0, 129], sizes = [8, 256], strides = [1, 1]} : vector<8x512xf32> to vector<8x256xf32>
    %cst_75 = arith.constant 0.000000e+00 : f32
    %161 = vector.broadcast %cst_75 : f32 to vector<8x256xf32>
    %162 = arith.select %51, %160, %161 : vector<8x256xi1>, vector<8x256xf32>
    %163 = vector.extract_strided_slice %148 {offsets = [0, 143], sizes = [8, 256], strides = [1, 1]} : vector<8x512xf32> to vector<8x256xf32>
    %cst_76 = arith.constant 0.000000e+00 : f32
    %164 = vector.broadcast %cst_76 : f32 to vector<8x256xf32>
    %165 = arith.select %49, %163, %164 : vector<8x256xi1>, vector<8x256xf32>
    %166 = vector.extract_strided_slice %148 {offsets = [0, 144], sizes = [8, 256], strides = [1, 1]} : vector<8x512xf32> to vector<8x256xf32>
    %167 = vector.extract_strided_slice %148 {offsets = [0, 145], sizes = [8, 256], strides = [1, 1]} : vector<8x512xf32> to vector<8x256xf32>
    %cst_77 = arith.constant 0.000000e+00 : f32
    %168 = vector.broadcast %cst_77 : f32 to vector<8x256xf32>
    %169 = arith.select %51, %167, %168 : vector<8x256xi1>, vector<8x256xf32>
    %170 = tpu.concatenate %151, %152, %155, %158, %159, %162, %165, %166, %169 in 0 : vector<8x256xf32>, vector<8x256xf32>, vector<8x256xf32>, vector<8x256xf32>, vector<8x256xf32>, vector<8x256xf32>, vector<8x256xf32>, vector<8x256xf32>, vector<8x256xf32> -> vector<72x256xf32>
    %c0_78 = arith.constant 0 : index
    %c0_79 = arith.constant 0 : index
    %171 = vector.load %arg13[%c0_78, %c0_79] : memref<8x72xf32, #tpu.memory_space<vmem>>, vector<8x72xf32>
    %cst_80 = arith.constant dense<0.000000e+00> : vector<8x256xf32>
    %172 = tpu.matmul %171, %170, %cst_80 {dimension_numbers = #tpu.dot_dimension_numbers<[1], [0], [0], [1], [0, 0, 1, 1], [], []>} : vector<8x72xf32>, vector<72x256xf32>, vector<8x256xf32> -> vector<8x256xf32>
    %c0_81 = arith.constant 0 : index
    %c0_82 = arith.constant 0 : index
    %173 = vector.load %arg14[%c0_81, %c0_82] : memref<8x1xf32, #tpu.memory_space<vmem>>, vector<8x1xf32>
    %174 = vector.broadcast %173 : vector<8x1xf32> to vector<8x256xf32>
    %175 = arith.addf %172, %174 : vector<8x256xf32>
    %cst_83 = arith.constant dense<0.000000e+00> : vector<8xf32>
    %176 = vector.multi_reduction <add>, %175, %cst_83 [1] : vector<8x256xf32> to vector<8xf32>
    %177 = vector.shape_cast %176 : vector<8xf32> to vector<8x1xf32>
    %cst_84 = arith.constant 2.560000e+02 : f32
    %178 = vector.broadcast %cst_84 : f32 to vector<8x1xf32>
    %179 = arith.divf %177, %178 : vector<8x1xf32>
    %180 = vector.broadcast %179 : vector<8x1xf32> to vector<8x256xf32>
    %181 = arith.subf %175, %180 : vector<8x256xf32>
    %182 = arith.mulf %181, %181 : vector<8x256xf32>
    %cst_85 = arith.constant dense<0.000000e+00> : vector<8xf32>
    %183 = vector.multi_reduction <add>, %182, %cst_85 [1] : vector<8x256xf32> to vector<8xf32>
    %184 = vector.shape_cast %183 : vector<8xf32> to vector<8x1xf32>
    %cst_86 = arith.constant 2.560000e+02 : f32
    %185 = vector.broadcast %cst_86 : f32 to vector<8x1xf32>
    %186 = arith.divf %184, %185 : vector<8x1xf32>
    %cst_87 = arith.constant 9.99999974E-6 : f32
    %187 = vector.broadcast %cst_87 : f32 to vector<8x1xf32>
    %188 = arith.addf %186, %187 : vector<8x1xf32>
    %189 = math.rsqrt %188 : vector<8x1xf32>
    %190 = arith.mulf %25, %189 : vector<8x1xf32>
    %191 = vector.broadcast %190 : vector<8x1xf32> to vector<8x256xf32>
    %192 = arith.mulf %181, %191 : vector<8x256xf32>
    %193 = vector.broadcast %22 : vector<8x1xf32> to vector<8x256xf32>
    %194 = arith.addf %192, %193 : vector<8x256xf32>
    %c0_88 = arith.constant 0 : index
    %c128_89 = arith.constant 128 : index
    %195 = vector.load %arg18[%c0_88, %c128_89] : memref<8x512xf32, #tpu.memory_space<vmem>>, vector<8x256xf32>
    tpu.vector_store %arg18[%c0_88, %c128_89], %194 {strides = array<i32>} : memref<8x512xf32, #tpu.memory_space<vmem>>, vector<8x256xf32>,
    %c0_90 = arith.constant 0 : index
    %c0_91 = arith.constant 0 : index
    %196 = vector.load %arg18[%c0_90, %c0_91] : memref<8x512xf32, #tpu.memory_space<vmem>>, vector<8x512xf32>
    %197 = vector.extract_strided_slice %196 {offsets = [0, 111], sizes = [8, 256], strides = [1, 1]} : vector<8x512xf32> to vector<8x256xf32>
    %cst_92 = arith.constant 0.000000e+00 : f32
    %198 = vector.broadcast %cst_92 : f32 to vector<8x256xf32>
    %199 = arith.select %49, %197, %198 : vector<8x256xi1>, vector<8x256xf32>
    %200 = vector.extract_strided_slice %196 {offsets = [0, 112], sizes = [8, 256], strides = [1, 1]} : vector<8x512xf32> to vector<8x256xf32>
    %201 = vector.extract_strided_slice %196 {offsets = [0, 113], sizes = [8, 256], strides = [1, 1]} : vector<8x512xf32> to vector<8x256xf32>
    %cst_93 = arith.constant 0.000000e+00 : f32
    %202 = vector.broadcast %cst_93 : f32 to vector<8x256xf32>
    %203 = arith.select %51, %201, %202 : vector<8x256xi1>, vector<8x256xf32>
    %204 = vector.extract_strided_slice %196 {offsets = [0, 127], sizes = [8, 256], strides = [1, 1]} : vector<8x512xf32> to vector<8x256xf32>
    %cst_94 = arith.constant 0.000000e+00 : f32
    %205 = vector.broadcast %cst_94 : f32 to vector<8x256xf32>
    %206 = arith.select %49, %204, %205 : vector<8x256xi1>, vector<8x256xf32>
    %207 = vector.extract_strided_slice %196 {offsets = [0, 128], sizes = [8, 256], strides = [1, 1]} : vector<8x512xf32> to vector<8x256xf32>
    %208 = vector.extract_strided_slice %196 {offsets = [0, 129], sizes = [8, 256], strides = [1, 1]} : vector<8x512xf32> to vector<8x256xf32>
    %cst_95 = arith.constant 0.000000e+00 : f32
    %209 = vector.broadcast %cst_95 : f32 to vector<8x256xf32>
    %210 = arith.select %51, %208, %209 : vector<8x256xi1>, vector<8x256xf32>
    %211 = vector.extract_strided_slice %196 {offsets = [0, 143], sizes = [8, 256], strides = [1, 1]} : vector<8x512xf32> to vector<8x256xf32>
    %cst_96 = arith.constant 0.000000e+00 : f32
    %212 = vector.broadcast %cst_96 : f32 to vector<8x256xf32>
    %213 = arith.select %49, %211, %212 : vector<8x256xi1>, vector<8x256xf32>
    %214 = vector.extract_strided_slice %196 {offsets = [0, 144], sizes = [8, 256], strides = [1, 1]} : vector<8x512xf32> to vector<8x256xf32>
    %215 = vector.extract_strided_slice %196 {offsets = [0, 145], sizes = [8, 256], strides = [1, 1]} : vector<8x512xf32> to vector<8x256xf32>
    %cst_97 = arith.constant 0.000000e+00 : f32
    %216 = vector.broadcast %cst_97 : f32 to vector<8x256xf32>
    %217 = arith.select %51, %215, %216 : vector<8x256xi1>, vector<8x256xf32>
    %218 = tpu.concatenate %199, %200, %203, %206, %207, %210, %213, %214, %217 in 0 : vector<8x256xf32>, vector<8x256xf32>, vector<8x256xf32>, vector<8x256xf32>, vector<8x256xf32>, vector<8x256xf32>, vector<8x256xf32>, vector<8x256xf32>, vector<8x256xf32> -> vector<72x256xf32>
    %c0_98 = arith.constant 0 : index
    %c0_99 = arith.constant 0 : index
    %219 = vector.load %arg15[%c0_98, %c0_99] : memref<3x72xf32, #tpu.memory_space<vmem>>, vector<3x72xf32>
    %cst_100 = arith.constant dense<0.000000e+00> : vector<3x256xf32>
    %220 = tpu.matmul %219, %218, %cst_100 {dimension_numbers = #tpu.dot_dimension_numbers<[1], [0], [0], [1], [0, 0, 1, 1], [], []>} : vector<3x72xf32>, vector<72x256xf32>, vector<3x256xf32> -> vector<3x256xf32>
    %c0_101 = arith.constant 0 : index
    %c0_102 = arith.constant 0 : index
    %221 = vector.load %arg16[%c0_101, %c0_102] : memref<3x1xf32, #tpu.memory_space<vmem>>, vector<3x1xf32>
    %222 = vector.broadcast %221 : vector<3x1xf32> to vector<3x256xf32>
    %223 = arith.addf %220, %222 : vector<3x256xf32>
    %224 = math.tanh %223 : vector<3x256xf32>
    %c0_103 = arith.constant 0 : index
    %c0_104 = arith.constant 0 : index
    %c0_105 = arith.constant 0 : index
    %225 = vector.load %arg17[%c0_103, %c0_104, %c0_105] : memref<1x3x256xf32, #tpu.memory_space<vmem>>, vector<1x3x256xf32>
    %226 = vector.shape_cast %225 : vector<1x3x256xf32> to vector<3x256xf32>
    %227 = vector.shape_cast %224 : vector<3x256xf32> to vector<1x3x256xf32>
    tpu.vector_store %arg17[%c0_103, %c0_104, %c0_105], %227 {strides = array<i32>} : memref<1x3x256xf32, #tpu.memory_space<vmem>>, vector<1x3x256xf32>,
    return
  }
  func.func @transform_0(%arg0: i32) -> (i32, i32, i32) {
    %c0_i32 = arith.constant 0 : i32
    %c0_i32_0 = arith.constant 0 : i32
    %c0_i32_1 = arith.constant 0 : i32
    return %arg0, %c0_i32, %c0_i32_0 : i32, i32, i32
  }
  func.func @transform_1(%arg0: i32) -> (i32, i32, i32) {
    %c0_i32 = arith.constant 0 : i32
    %c0_i32_0 = arith.constant 0 : i32
    %c0_i32_1 = arith.constant 0 : i32
    return %arg0, %c0_i32, %c0_i32_0 : i32, i32, i32
  }
  func.func @transform_2(%arg0: i32) -> (i32, i32) {
    %c0_i32 = arith.constant 0 : i32
    %c0_i32_0 = arith.constant 0 : i32
    %c0_i32_1 = arith.constant 0 : i32
    return %c0_i32, %c0_i32_0 : i32, i32
  }
  func.func @transform_3(%arg0: i32) -> (i32, i32) {
    %c0_i32 = arith.constant 0 : i32
    %c0_i32_0 = arith.constant 0 : i32
    %c0_i32_1 = arith.constant 0 : i32
    return %c0_i32, %c0_i32_0 : i32, i32
  }
  func.func @transform_4(%arg0: i32) -> (i32, i32) {
    %c0_i32 = arith.constant 0 : i32
    %c0_i32_0 = arith.constant 0 : i32
    %c0_i32_1 = arith.constant 0 : i32
    return %c0_i32, %c0_i32_0 : i32, i32
  }
  func.func @transform_5(%arg0: i32) -> (i32, i32) {
    %c0_i32 = arith.constant 0 : i32
    %c0_i32_0 = arith.constant 0 : i32
    %c0_i32_1 = arith.constant 0 : i32
    return %c0_i32, %c0_i32_0 : i32, i32
  }
  func.func @transform_6(%arg0: i32) -> (i32, i32) {
    %c0_i32 = arith.constant 0 : i32
    %c0_i32_0 = arith.constant 0 : i32
    %c0_i32_1 = arith.constant 0 : i32
    return %c0_i32, %c0_i32_0 : i32, i32
  }
  func.func @transform_7(%arg0: i32) -> (i32, i32) {
    %c0_i32 = arith.constant 0 : i32
    %c0_i32_0 = arith.constant 0 : i32
    %c0_i32_1 = arith.constant 0 : i32
    return %c0_i32, %c0_i32_0 : i32, i32
  }
  func.func @transform_8(%arg0: i32) -> (i32, i32) {
    %c0_i32 = arith.constant 0 : i32
    %c0_i32_0 = arith.constant 0 : i32
    %c0_i32_1 = arith.constant 0 : i32
    return %c0_i32, %c0_i32_0 : i32, i32
  }
  func.func @transform_9(%arg0: i32) -> (i32, i32) {
    %c0_i32 = arith.constant 0 : i32
    %c0_i32_0 = arith.constant 0 : i32
    %c0_i32_1 = arith.constant 0 : i32
    return %c0_i32, %c0_i32_0 : i32, i32
  }
  func.func @transform_10(%arg0: i32) -> (i32, i32) {
    %c0_i32 = arith.constant 0 : i32
    %c0_i32_0 = arith.constant 0 : i32
    %c0_i32_1 = arith.constant 0 : i32
    return %c0_i32, %c0_i32_0 : i32, i32
  }
  func.func @transform_11(%arg0: i32) -> (i32, i32) {
    %c0_i32 = arith.constant 0 : i32
    %c0_i32_0 = arith.constant 0 : i32
    %c0_i32_1 = arith.constant 0 : i32
    return %c0_i32, %c0_i32_0 : i32, i32
  }
  func.func @transform_12(%arg0: i32) -> (i32, i32) {
    %c0_i32 = arith.constant 0 : i32
    %c0_i32_0 = arith.constant 0 : i32
    %c0_i32_1 = arith.constant 0 : i32
    return %c0_i32, %c0_i32_0 : i32, i32
  }
  func.func @transform_13(%arg0: i32) -> (i32, i32) {
    %c0_i32 = arith.constant 0 : i32
    %c0_i32_0 = arith.constant 0 : i32
    %c0_i32_1 = arith.constant 0 : i32
    return %c0_i32, %c0_i32_0 : i32, i32
  }
  func.func @transform_14(%arg0: i32) -> (i32, i32) {
    %c0_i32 = arith.constant 0 : i32
    %c0_i32_0 = arith.constant 0 : i32
    %c0_i32_1 = arith.constant 0 : i32
    return %c0_i32, %c0_i32_0 : i32, i32
  }
  func.func @transform_15(%arg0: i32) -> (i32, i32) {
    %c0_i32 = arith.constant 0 : i32
    %c0_i32_0 = arith.constant 0 : i32
    %c0_i32_1 = arith.constant 0 : i32
    return %c0_i32, %c0_i32_0 : i32, i32
  }
  func.func @transform_16(%arg0: i32) -> (i32, i32, i32) {
    %c0_i32 = arith.constant 0 : i32
    %c0_i32_0 = arith.constant 0 : i32
    %c0_i32_1 = arith.constant 0 : i32
    return %arg0, %c0_i32, %c0_i32_0 : i32, i32, i32
  }
}

</mosaic_0001>

<llo_original>
// kernel: ada_decoder_forward.1
$region0: #{ada_decoder_forward.1}
  #allocation0 [shape = 'u32[]', space=smem, size = 0x4, offset = 0x4, fixed_abs, tag = 'smem constant byte address 0x4 - core index']
  #allocation1 [shape = 'u32[144,128]{1,0:T(1,128)}', space=vmem, size = 0x12000, scoped, tag = 'internal scratch']
  #allocation2 [shape = 'f32[8,512]{1,0:T(8,128)}', space=vmem, size = 0x4000, scoped, tag = 'scratch operand']
  %s0 = inlined_call_operand.vmem [shape: f32[2,8,1], index: 0, kind: input, shape index: {}]
  %s1 = inlined_call_operand.vmem [shape: f32[2,8,256], index: 1, kind: input, shape index: {}]
  %s2 = inlined_call_operand.vmem [shape: f32[256,8], index: 2, kind: input, shape index: {}]
  %s3 = inlined_call_operand.vmem [shape: f32[256,1], index: 3, kind: input, shape index: {}]
  %s4 = inlined_call_operand.vmem [shape: f32[256,256], index: 4, kind: input, shape index: {}]
  %s5 = inlined_call_operand.vmem [shape: f32[256,1], index: 5, kind: input, shape index: {}]
  %s6 = inlined_call_operand.vmem [shape: f32[48,256], index: 6, kind: input, shape index: {}]
  %s7 = inlined_call_operand.vmem [shape: f32[48,1], index: 7, kind: input, shape index: {}]
  %s8 = inlined_call_operand.vmem [shape: f32[8,72], index: 8, kind: input, shape index: {}]
  %s9 = inlined_call_operand.vmem [shape: f32[8,1], index: 9, kind: input, shape index: {}]
  %s10 = inlined_call_operand.vmem [shape: f32[8,72], index: 10, kind: input, shape index: {}]
  %s11 = inlined_call_operand.vmem [shape: f32[8,1], index: 11, kind: input, shape index: {}]
  %s12 = inlined_call_operand.vmem [shape: f32[8,72], index: 12, kind: input, shape index: {}]
  %s13 = inlined_call_operand.vmem [shape: f32[8,1], index: 13, kind: input, shape index: {}]
  %s14 = inlined_call_operand.vmem [shape: f32[3,72], index: 14, kind: input, shape index: {}]
  %s15 = inlined_call_operand.vmem [shape: f32[3,1], index: 15, kind: input, shape index: {}]
  %s16 = inlined_call_operand.vmem [shape: f32[2,3,256], index: 16, kind: output, shape index: {}]
  %s17 = sld [smem:[#allocation0]]
  $region97: #{ada_decoder_forward.1} parent=0
    _
  %s19 = ssub.s32 1, %s17
  %s20 = scalar_select 0, %s19, %s17
  loop: start=0, step=1, limit=4
  $region2: #{ada_decoder_forward.1} parent=0 // loop_pre_header
    _
  $region3: #{ada_decoder_forward.1} parent=0 // loop_header
    %s22 = sphi 0, %s26
    %p23 = scmp.ge.s32.totalorder %s22, 4
    %s32 = sphi 0, %s34
    %s35 = sphi 0, %s32
    %s36 = sphi 0, %s35
    %s52 = sphi 0, %s36
    %s58 = sphi 0, %s60
    %s61 = sphi 0, %s58
    %s62 = sphi 0, %s61
    %s78 = sphi 0, %s62
    %s82 = sphi 0, %s82
    %s84 = sphi 0, %s82
    %s85 = sphi 0, %s84
    %s99 = sphi 0, %s85
    %s103 = sphi 0, %s103
    %s105 = sphi 0, %s103
    %s106 = sphi 0, %s105
    %s120 = sphi 0, %s106
    %s124 = sphi 0, %s124
    %s126 = sphi 0, %s124
    %s127 = sphi 0, %s126
    %s141 = sphi 0, %s127
    %s145 = sphi 0, %s145
    %s147 = sphi 0, %s145
    %s148 = sphi 0, %s147
    %s162 = sphi 0, %s148
    %s166 = sphi 0, %s166
    %s168 = sphi 0, %s166
    %s169 = sphi 0, %s168
    %s183 = sphi 0, %s169
    %s187 = sphi 0, %s187
    %s189 = sphi 0, %s187
    %s190 = sphi 0, %s189
    %s204 = sphi 0, %s190
    %s208 = sphi 0, %s208
    %s210 = sphi 0, %s208
    %s211 = sphi 0, %s210
    %s225 = sphi 0, %s211
    %s229 = sphi 0, %s229
    %s231 = sphi 0, %s229
    %s232 = sphi 0, %s231
    %s246 = sphi 0, %s232
    %s250 = sphi 0, %s250
    %s252 = sphi 0, %s250
    %s253 = sphi 0, %s252
    %s267 = sphi 0, %s253
    %s271 = sphi 0, %s271
    %s273 = sphi 0, %s271
    %s274 = sphi 0, %s273
    %s288 = sphi 0, %s274
    %s292 = sphi 0, %s292
    %s294 = sphi 0, %s292
    %s295 = sphi 0, %s294
    %s309 = sphi 0, %s295
    %s313 = sphi 0, %s313
    %s315 = sphi 0, %s313
    %s316 = sphi 0, %s315
    %s330 = sphi 0, %s316
    %s334 = sphi 0, %s334
    %s336 = sphi 0, %s334
    %s337 = sphi 0, %s336
    %s351 = sphi 0, %s337
    %s355 = sphi 0, %s355
    %s357 = sphi 0, %s355
    %s358 = sphi 0, %s357
    %s372 = sphi 0, %s358
    %s378 = sphi 0, %s380
    %s381 = sphi 0, %s378
    %s382 = sphi 0, %s381
    %s398 = sphi 0, %s382
  $region4: #{ada_decoder_forward.1} parent=0 // loop_header_branch
    %25 = sbr.rel (%p23) target = $region8
  $region5: #{ada_decoder_forward.1} parent=0 // loop_body
    %s27 = ssub.s32 %s22, 1
    %s28 = ssub.s32 %s22, 2
    %s29 = sadd.s32 %s22, 1
    %s30 = ssub.s32 %s22, %s29
    %p31 = scmp.eq.s32.totalorder %s30, 0
    %s33 = sadd.s32 %s32, 1
    %s34 = scalar_select %p31, %s32, %s33
    %p37 = pneg %p31
    %p38 = scmp.eq.s32.totalorder %s22, 1
    %p39 = por %p37, %p38
    %p40 = scmp.ne.s32.totalorder %s32, %s35
    %p41 = scmp.eq.s32.totalorder %s22, 0
    %p42 = por %p40, %p41
    %p43 = scmp.ne.s32.totalorder %s32, %s35
    %p44 = scmp.eq.s32.totalorder %s27, 1
    %p45 = por %p43, %p44
    %p46 = scmp.ne.s32.totalorder %s35, %s36
    %p47 = scmp.eq.s32.totalorder %s27, 0
    %p48 = por %p46, %p47
    %p49 = scmp.ne.s32.totalorder %s35, %s36
    %p50 = scmp.eq.s32.totalorder %s28, 1
    %p51 = por %p49, %p50
    %p53 = scmp.ne.s32.totalorder %s36, %s52
    %p54 = scmp.eq.s32.totalorder %s28, 0
    %p55 = por %p53, %p54
    %s56 = ssub.s32 %s22, %s29
    %p57 = scmp.eq.s32.totalorder %s56, 0
    %s59 = sadd.s32 %s58, 1
    %s60 = scalar_select %p57, %s58, %s59
    %p63 = pneg %p57
    %p64 = scmp.eq.s32.totalorder %s22, 1
    %p65 = por %p63, %p64
    %p66 = scmp.ne.s32.totalorder %s58, %s61
    %p67 = scmp.eq.s32.totalorder %s22, 0
    %p68 = por %p66, %p67
    %p69 = scmp.ne.s32.totalorder %s58, %s61
    %p70 = scmp.eq.s32.totalorder %s27, 1
    %p71 = por %p69, %p70
    %p72 = scmp.ne.s32.totalorder %s61, %s62
    %p73 = scmp.eq.s32.totalorder %s27, 0
    %p74 = por %p72, %p73
    %p75 = scmp.ne.s32.totalorder %s61, %s62
    %p76 = scmp.eq.s32.totalorder %s28, 1
    %p77 = por %p75, %p76
    %p79 = scmp.ne.s32.totalorder %s62, %s78
    %p80 = scmp.eq.s32.totalorder %s28, 0
    %p81 = por %p79, %p80
    %s83 = sadd.s32 %s82, 1
    %p86 = scmp.eq.s32.totalorder %s22, 1
    %p87 = scmp.ne.s32.totalorder %s82, %s84
    %p88 = scmp.eq.s32.totalorder %s22, 0
    %p89 = por %p87, %p88
    %p90 = scmp.ne.s32.totalorder %s82, %s84
    %p91 = scmp.eq.s32.totalorder %s27, 1
    %p92 = por %p90, %p91
    %p93 = scmp.ne.s32.totalorder %s84, %s85
    %p94 = scmp.eq.s32.totalorder %s27, 0
    %p95 = por %p93, %p94
    %p96 = scmp.ne.s32.totalorder %s84, %s85
    %p97 = scmp.eq.s32.totalorder %s28, 1
    %p98 = por %p96, %p97
    %p100 = scmp.ne.s32.totalorder %s85, %s99
    %p101 = scmp.eq.s32.totalorder %s28, 0
    %p102 = por %p100, %p101
    %s104 = sadd.s32 %s103, 1
    %p107 = scmp.eq.s32.totalorder %s22, 1
    %p108 = scmp.ne.s32.totalorder %s103, %s105
    %p109 = scmp.eq.s32.totalorder %s22, 0
    %p110 = por %p108, %p109
    %p111 = scmp.ne.s32.totalorder %s103, %s105
    %p112 = scmp.eq.s32.totalorder %s27, 1
    %p113 = por %p111, %p112
    %p114 = scmp.ne.s32.totalorder %s105, %s106
    %p115 = scmp.eq.s32.totalorder %s27, 0
    %p116 = por %p114, %p115
    %p117 = scmp.ne.s32.totalorder %s105, %s106
    %p118 = scmp.eq.s32.totalorder %s28, 1
    %p119 = por %p117, %p118
    %p121 = scmp.ne.s32.totalorder %s106, %s120
    %p122 = scmp.eq.s32.totalorder %s28, 0
    %p123 = por %p121, %p122
    %s125 = sadd.s32 %s124, 1
    %p128 = scmp.eq.s32.totalorder %s22, 1
    %p129 = scmp.ne.s32.totalorder %s124, %s126
    %p130 = scmp.eq.s32.totalorder %s22, 0
    %p131 = por %p129, %p130
    %p132 = scmp.ne.s32.totalorder %s124, %s126
    %p133 = scmp.eq.s32.totalorder %s27, 1
    %p134 = por %p132, %p133
    %p135 = scmp.ne.s32.totalorder %s126, %s127
    %p136 = scmp.eq.s32.totalorder %s27, 0
    %p137 = por %p135, %p136
    %p138 = scmp.ne.s32.totalorder %s126, %s127
    %p139 = scmp.eq.s32.totalorder %s28, 1
    %p140 = por %p138, %p139
    %p142 = scmp.ne.s32.totalorder %s127, %s141
    %p143 = scmp.eq.s32.totalorder %s28, 0
    %p144 = por %p142, %p143
    %s146 = sadd.s32 %s145, 1
    %p149 = scmp.eq.s32.totalorder %s22, 1
    %p150 = scmp.ne.s32.totalorder %s145, %s147
    %p151 = scmp.eq.s32.totalorder %s22, 0
    %p152 = por %p150, %p151
    %p153 = scmp.ne.s32.totalorder %s145, %s147
    %p154 = scmp.eq.s32.totalorder %s27, 1
    %p155 = por %p153, %p154
    %p156 = scmp.ne.s32.totalorder %s147, %s148
    %p157 = scmp.eq.s32.totalorder %s27, 0
    %p158 = por %p156, %p157
    %p159 = scmp.ne.s32.totalorder %s147, %s148
    %p160 = scmp.eq.s32.totalorder %s28, 1
    %p161 = por %p159, %p160
    %p163 = scmp.ne.s32.totalorder %s148, %s162
    %p164 = scmp.eq.s32.totalorder %s28, 0
    %p165 = por %p163, %p164
    %s167 = sadd.s32 %s166, 1
    %p170 = scmp.eq.s32.totalorder %s22, 1
    %p171 = scmp.ne.s32.totalorder %s166, %s168
    %p172 = scmp.eq.s32.totalorder %s22, 0
    %p173 = por %p171, %p172
    %p174 = scmp.ne.s32.totalorder %s166, %s168
    %p175 = scmp.eq.s32.totalorder %s27, 1
    %p176 = por %p174, %p175
    %p177 = scmp.ne.s32.totalorder %s168, %s169
    %p178 = scmp.eq.s32.totalorder %s27, 0
    %p179 = por %p177, %p178
    %p180 = scmp.ne.s32.totalorder %s168, %s169
    %p181 = scmp.eq.s32.totalorder %s28, 1
    %p182 = por %p180, %p181
    %p184 = scmp.ne.s32.totalorder %s169, %s183
    %p185 = scmp.eq.s32.totalorder %s28, 0
    %p186 = por %p184, %p185
    %s188 = sadd.s32 %s187, 1
    %p191 = scmp.eq.s32.totalorder %s22, 1
    %p192 = scmp.ne.s32.totalorder %s187, %s189
    %p193 = scmp.eq.s32.totalorder %s22, 0
    %p194 = por %p192, %p193
    %p195 = scmp.ne.s32.totalorder %s187, %s189
    %p196 = scmp.eq.s32.totalorder %s27, 1
    %p197 = por %p195, %p196
    %p198 = scmp.ne.s32.totalorder %s189, %s190
    %p199 = scmp.eq.s32.totalorder %s27, 0
    %p200 = por %p198, %p199
    %p201 = scmp.ne.s32.totalorder %s189, %s190
    %p202 = scmp.eq.s32.totalorder %s28, 1
    %p203 = por %p201, %p202
    %p205 = scmp.ne.s32.totalorder %s190, %s204
    %p206 = scmp.eq.s32.totalorder %s28, 0
    %p207 = por %p205, %p206
    %s209 = sadd.s32 %s208, 1
    %p212 = scmp.eq.s32.totalorder %s22, 1
    %p213 = scmp.ne.s32.totalorder %s208, %s210
    %p214 = scmp.eq.s32.totalorder %s22, 0
    %p215 = por %p213, %p214
    %p216 = scmp.ne.s32.totalorder %s208, %s210
    %p217 = scmp.eq.s32.totalorder %s27, 1
    %p218 = por %p216, %p217
    %p219 = scmp.ne.s32.totalorder %s210, %s211
    %p220 = scmp.eq.s32.totalorder %s27, 0
    %p221 = por %p219, %p220
    %p222 = scmp.ne.s32.totalorder %s210, %s211
    %p223 = scmp.eq.s32.totalorder %s28, 1
    %p224 = por %p222, %p223
    %p226 = scmp.ne.s32.totalorder %s211, %s225
    %p227 = scmp.eq.s32.totalorder %s28, 0
    %p228 = por %p226, %p227
    %s230 = sadd.s32 %s229, 1
    %p233 = scmp.eq.s32.totalorder %s22, 1
    %p234 = scmp.ne.s32.totalorder %s229, %s231
    %p235 = scmp.eq.s32.totalorder %s22, 0
    %p236 = por %p234, %p235
    %p237 = scmp.ne.s32.totalorder %s229, %s231
    %p238 = scmp.eq.s32.totalorder %s27, 1
    %p239 = por %p237, %p238
    %p240 = scmp.ne.s32.totalorder %s231, %s232
    %p241 = scmp.eq.s32.totalorder %s27, 0
    %p242 = por %p240, %p241
    %p243 = scmp.ne.s32.totalorder %s231, %s232
    %p244 = scmp.eq.s32.totalorder %s28, 1
    %p245 = por %p243, %p244
    %p247 = scmp.ne.s32.totalorder %s232, %s246
    %p248 = scmp.eq.s32.totalorder %s28, 0
    %p249 = por %p247, %p248
    %s251 = sadd.s32 %s250, 1
    %p254 = scmp.eq.s32.totalorder %s22, 1
    %p255 = scmp.ne.s32.totalorder %s250, %s252
    %p256 = scmp.eq.s32.totalorder %s22, 0
    %p257 = por %p255, %p256
    %p258 = scmp.ne.s32.totalorder %s250, %s252
    %p259 = scmp.eq.s32.totalorder %s27, 1
    %p260 = por %p258, %p259
    %p261 = scmp.ne.s32.totalorder %s252, %s253
    %p262 = scmp.eq.s32.totalorder %s27, 0
    %p263 = por %p261, %p262
    %p264 = scmp.ne.s32.totalorder %s252, %s253
    %p265 = scmp.eq.s32.totalorder %s28, 1
    %p266 = por %p264, %p265
    %p268 = scmp.ne.s32.totalorder %s253, %s267
    %p269 = scmp.eq.s32.totalorder %s28, 0
    %p270 = por %p268, %p269
    %s272 = sadd.s32 %s271, 1
    %p275 = scmp.eq.s32.totalorder %s22, 1
    %p276 = scmp.ne.s32.totalorder %s271, %s273
    %p277 = scmp.eq.s32.totalorder %s22, 0
    %p278 = por %p276, %p277
    %p279 = scmp.ne.s32.totalorder %s271, %s273
    %p280 = scmp.eq.s32.totalorder %s27, 1
    %p281 = por %p279, %p280
    %p282 = scmp.ne.s32.totalorder %s273, %s274
    %p283 = scmp.eq.s32.totalorder %s27, 0
    %p284 = por %p282, %p283
    %p285 = scmp.ne.s32.totalorder %s273, %s274
    %p286 = scmp.eq.s32.totalorder %s28, 1
    %p287 = por %p285, %p286
    %p289 = scmp.ne.s32.totalorder %s274, %s288
    %p290 = scmp.eq.s32.totalorder %s28, 0
    %p291 = por %p289, %p290
    %s293 = sadd.s32 %s292, 1
    %p296 = scmp.eq.s32.totalorder %s22, 1
    %p297 = scmp.ne.s32.totalorder %s292, %s294
    %p298 = scmp.eq.s32.totalorder %s22, 0
    %p299 = por %p297, %p298
    %p300 = scmp.ne.s32.totalorder %s292, %s294
    %p301 = scmp.eq.s32.totalorder %s27, 1
    %p302 = por %p300, %p301
    %p303 = scmp.ne.s32.totalorder %s294, %s295
    %p304 = scmp.eq.s32.totalorder %s27, 0
    %p305 = por %p303, %p304
    %p306 = scmp.ne.s32.totalorder %s294, %s295
    %p307 = scmp.eq.s32.totalorder %s28, 1
    %p308 = por %p306, %p307
    %p310 = scmp.ne.s32.totalorder %s295, %s309
    %p311 = scmp.eq.s32.totalorder %s28, 0
    %p312 = por %p310, %p311
    %s314 = sadd.s32 %s313, 1
    %p317 = scmp.eq.s32.totalorder %s22, 1
    %p318 = scmp.ne.s32.totalorder %s313, %s315
    %p319 = scmp.eq.s32.totalorder %s22, 0
    %p320 = por %p318, %p319
    %p321 = scmp.ne.s32.totalorder %s313, %s315
    %p322 = scmp.eq.s32.totalorder %s27, 1
    %p323 = por %p321, %p322
    %p324 = scmp.ne.s32.totalorder %s315, %s316
    %p325 = scmp.eq.s32.totalorder %s27, 0
    %p326 = por %p324, %p325
    %p327 = scmp.ne.s32.totalorder %s315, %s316
    %p328 = scmp.eq.s32.totalorder %s28, 1
    %p329 = por %p327, %p328
    %p331 = scmp.ne.s32.totalorder %s316, %s330
    %p332 = scmp.eq.s32.totalorder %s28, 0
    %p333 = por %p331, %p332
    %s335 = sadd.s32 %s334, 1
    %p338 = scmp.eq.s32.totalorder %s22, 1
    %p339 = scmp.ne.s32.totalorder %s334, %s336
    %p340 = scmp.eq.s32.totalorder %s22, 0
    %p341 = por %p339, %p340
    %p342 = scmp.ne.s32.totalorder %s334, %s336
    %p343 = scmp.eq.s32.totalorder %s27, 1
    %p344 = por %p342, %p343
    %p345 = scmp.ne.s32.totalorder %s336, %s337
    %p346 = scmp.eq.s32.totalorder %s27, 0
    %p347 = por %p345, %p346
    %p348 = scmp.ne.s32.totalorder %s336, %s337
    %p349 = scmp.eq.s32.totalorder %s28, 1
    %p350 = por %p348, %p349
    %p352 = scmp.ne.s32.totalorder %s337, %s351
    %p353 = scmp.eq.s32.totalorder %s28, 0
    %p354 = por %p352, %p353
    %s356 = sadd.s32 %s355, 1
    %p359 = scmp.eq.s32.totalorder %s22, 1
    %p360 = scmp.ne.s32.totalorder %s355, %s357
    %p361 = scmp.eq.s32.totalorder %s22, 0
    %p362 = por %p360, %p361
    %p363 = scmp.ne.s32.totalorder %s355, %s357
    %p364 = scmp.eq.s32.totalorder %s27, 1
    %p365 = por %p363, %p364
    %p366 = scmp.ne.s32.totalorder %s357, %s358
    %p367 = scmp.eq.s32.totalorder %s27, 0
    %p368 = por %p366, %p367
    %p369 = scmp.ne.s32.totalorder %s357, %s358
    %p370 = scmp.eq.s32.totalorder %s28, 1
    %p371 = por %p369, %p370
    %p373 = scmp.ne.s32.totalorder %s358, %s372
    %p374 = scmp.eq.s32.totalorder %s28, 0
    %p375 = por %p373, %p374
    %s376 = ssub.s32 %s22, %s29
    %p377 = scmp.eq.s32.totalorder %s376, 0
    %s379 = sadd.s32 %s378, 1
    %s380 = scalar_select %p377, %s378, %s379
    %p383 = pneg %p377
    %p384 = scmp.eq.s32.totalorder %s22, 1
    %p385 = por %p383, %p384
    %p386 = scmp.ne.s32.totalorder %s378, %s381
    %p387 = scmp.eq.s32.totalorder %s22, 0
    %p388 = por %p386, %p387
    %p389 = scmp.ne.s32.totalorder %s378, %s381
    %p390 = scmp.eq.s32.totalorder %s27, 1
    %p391 = por %p389, %p390
    %p392 = scmp.ne.s32.totalorder %s381, %s382
    %p393 = scmp.eq.s32.totalorder %s27, 0
    %p394 = por %p392, %p393
    %p395 = scmp.ne.s32.totalorder %s381, %s382
    %p396 = scmp.eq.s32.totalorder %s28, 1
    %p397 = por %p395, %p396
    %p399 = scmp.ne.s32.totalorder %s382, %s398
    %p400 = scmp.eq.s32.totalorder %s28, 0
    %p401 = por %p399, %p400
    %p402 = scmp.le.s32.totalorder 1, %s22
    %p403 = scmp.lt.s32.totalorder %s22, 3
    %p404 = pnand %p402, %p403
    %p405 = pneg %p404
    // Predicated region
    $region9: #{ada_decoder_forward.1} parent=5 // pred_check
      _
    $region10: #{ada_decoder_forward.1} parent=5 // pred_check_branch
      %407 = sbr.rel (%p404) target = $region12
    $region11: #{ada_decoder_forward.1} parent=5 // pred_region
      %s408 = ssub.s32 %s22, 1
      // Predicated region
      $region13: #{ada_decoder_forward.1} parent=11 // pred_check
        %p409 = pneg %p95
      $region14: #{ada_decoder_forward.1} parent=11 // pred_check_branch
        %411 = sbr.rel (%p409) target = $region16
      $region15: #{ada_decoder_forward.1} parent=11 // pred_region
        _
      $region16: #{ada_decoder_forward.1} parent=11 // pred_fallthru
        _
      // Predicated region
      $region17: #{ada_decoder_forward.1} parent=11 // pred_check
        %p412 = pneg %p116
      $region18: #{ada_decoder_forward.1} parent=11 // pred_check_branch
        %414 = sbr.rel (%p412) target = $region20
      $region19: #{ada_decoder_forward.1} parent=11 // pred_region
        _
      $region20: #{ada_decoder_forward.1} parent=11 // pred_fallthru
        _
      // Predicated region
      $region21: #{ada_decoder_forward.1} parent=11 // pred_check
        %p415 = pneg %p137
      $region22: #{ada_decoder_forward.1} parent=11 // pred_check_branch
        %417 = sbr.rel (%p415) target = $region24
      $region23: #{ada_decoder_forward.1} parent=11 // pred_region
        _
      $region24: #{ada_decoder_forward.1} parent=11 // pred_fallthru
        _
      // Predicated region
      $region25: #{ada_decoder_forward.1} parent=11 // pred_check
        %p418 = pneg %p158
      $region26: #{ada_decoder_forward.1} parent=11 // pred_check_branch
        %420 = sbr.rel (%p418) target = $region28
      $region27: #{ada_decoder_forward.1} parent=11 // pred_region
        _
      $region28: #{ada_decoder_forward.1} parent=11 // pred_fallthru
        _
      // Predicated region
      $region29: #{ada_decoder_forward.1} parent=11 // pred_check
        %p421 = pneg %p179
      $region30: #{ada_decoder_forward.1} parent=11 // pred_check_branch
        %423 = sbr.rel (%p421) target = $region32
      $region31: #{ada_decoder_forward.1} parent=11 // pred_region
        _
      $region32: #{ada_decoder_forward.1} parent=11 // pred_fallthru
        _
      // Predicated region
      $region33: #{ada_decoder_forward.1} parent=11 // pred_check
        %p424 = pneg %p200
      $region34: #{ada_decoder_forward.1} parent=11 // pred_check_branch
        %426 = sbr.rel (%p424) target = $region36
      $region35: #{ada_decoder_forward.1} parent=11 // pred_region
        _
      $region36: #{ada_decoder_forward.1} parent=11 // pred_fallthru
        _
      // Predicated region
      $region37: #{ada_decoder_forward.1} parent=11 // pred_check
        %p427 = pneg %p221
      $region38: #{ada_decoder_forward.1} parent=11 // pred_check_branch
        %429 = sbr.rel (%p427) target = $region40
      $region39: #{ada_decoder_forward.1} parent=11 // pred_region
        _
      $region40: #{ada_decoder_forward.1} parent=11 // pred_fallthru
        _
      // Predicated region
      $region41: #{ada_decoder_forward.1} parent=11 // pred_check
        %p430 = pneg %p242
      $region42: #{ada_decoder_forward.1} parent=11 // pred_check_branch
        %432 = sbr.rel (%p430) target = $region44
      $region43: #{ada_decoder_forward.1} parent=11 // pred_region
        _
      $region44: #{ada_decoder_forward.1} parent=11 // pred_fallthru
        _
      // Predicated region
      $region45: #{ada_decoder_forward.1} parent=11 // pred_check
        %p433 = pneg %p263
      $region46: #{ada_decoder_forward.1} parent=11 // pred_check_branch
        %435 = sbr.rel (%p433) target = $region48
      $region47: #{ada_decoder_forward.1} parent=11 // pred_region
        _
      $region48: #{ada_decoder_forward.1} parent=11 // pred_fallthru
        _
      // Predicated region
      $region49: #{ada_decoder_forward.1} parent=11 // pred_check
        %p436 = pneg %p284
      $region50: #{ada_decoder_forward.1} parent=11 // pred_check_branch
        %438 = sbr.rel (%p436) target = $region52
      $region51: #{ada_decoder_forward.1} parent=11 // pred_region
        _
      $region52: #{ada_decoder_forward.1} parent=11 // pred_fallthru
        _
      // Predicated region
      $region53: #{ada_decoder_forward.1} parent=11 // pred_check
        %p439 = pneg %p305
      $region54: #{ada_decoder_forward.1} parent=11 // pred_check_branch
        %441 = sbr.rel (%p439) target = $region56
      $region55: #{ada_decoder_forward.1} parent=11 // pred_region
        _
      $region56: #{ada_decoder_forward.1} parent=11 // pred_fallthru
        _
      // Predicated region
      $region57: #{ada_decoder_forward.1} parent=11 // pred_check
        %p442 = pneg %p326
      $region58: #{ada_decoder_forward.1} parent=11 // pred_check_branch
        %444 = sbr.rel (%p442) target = $region60
      $region59: #{ada_decoder_forward.1} parent=11 // pred_region
        _
      $region60: #{ada_decoder_forward.1} parent=11 // pred_fallthru
        _
      // Predicated region
      $region61: #{ada_decoder_forward.1} parent=11 // pred_check
        %p445 = pneg %p347
      $region62: #{ada_decoder_forward.1} parent=11 // pred_check_branch
        %447 = sbr.rel (%p445) target = $region64
      $region63: #{ada_decoder_forward.1} parent=11 // pred_region
        _
      $region64: #{ada_decoder_forward.1} parent=11 // pred_fallthru
        _
      // Predicated region
      $region65: #{ada_decoder_forward.1} parent=11 // pred_check
        %p448 = pneg %p368
      $region66: #{ada_decoder_forward.1} parent=11 // pred_check_branch
        %450 = sbr.rel (%p448) target = $region68
      $region67: #{ada_decoder_forward.1} parent=11 // pred_region
        _
      $region68: #{ada_decoder_forward.1} parent=11 // pred_fallthru
        _
    $region12: #{ada_decoder_forward.1} parent=5 // pred_fallthru
      _
    %p451 = scmp.lt.s32.totalorder %s22, 2
    // Predicated region
    $region69: #{ada_decoder_forward.1} parent=5 // pred_check
      %p452 = pneg %p451
    $region70: #{ada_decoder_forward.1} parent=5 // pred_check_branch
      %454 = sbr.rel (%p452) target = $region72
    $region71: #{ada_decoder_forward.1} parent=5 // pred_region
      // Predicated region
      $region73: #{ada_decoder_forward.1} parent=71 // pred_check
        %p455 = pneg %p42
      $region74: #{ada_decoder_forward.1} parent=71 // pred_check_branch
        %457 = sbr.rel (%p455) target = $region76
      $region75: #{ada_decoder_forward.1} parent=71 // pred_region
        %p458 = scmp.lt.s32.totalorder %s22, 1
        %s459 = scalar_select %p458, %s22, 1
        %s460 = smul.addr %s459, 8
        %s461 = scalar_lea.vmem %s0, %s460
      $region76: #{ada_decoder_forward.1} parent=71 // pred_fallthru
        _
      // Predicated region
      $region77: #{ada_decoder_forward.1} parent=71 // pred_check
        %p462 = pneg %p68
      $region78: #{ada_decoder_forward.1} parent=71 // pred_check_branch
        %464 = sbr.rel (%p462) target = $region80
      $region79: #{ada_decoder_forward.1} parent=71 // pred_region
        %p465 = scmp.lt.s32.totalorder %s22, 1
        %s466 = scalar_select %p465, %s22, 1
        %s467 = smul.addr %s466, 2
        %s468 = smul.addr %s467, 8
        %s469 = scalar_lea.vmem %s1, %s468
      $region80: #{ada_decoder_forward.1} parent=71 // pred_fallthru
        _
    $region72: #{ada_decoder_forward.1} parent=5 // pred_fallthru
      _
    %p470 = scmp.le.s32.totalorder 1, %s22
    %p471 = scmp.lt.s32.totalorder %s22, 3
    %p472 = pnand %p470, %p471
    %p473 = pneg %p472
    // Predicated region
    $region81: #{ada_decoder_forward.1} parent=5 // pred_check
      _
    $region82: #{ada_decoder_forward.1} parent=5 // pred_check_branch
      %475 = sbr.rel (%p472) target = $region84
    $region83: #{ada_decoder_forward.1} parent=5 // pred_region
      %s476 = ssub.s32 %s22, 1
      %p477 = scmp.lt.s32.totalorder %s27, 1
      %s478 = scalar_select %p477, %s27, 1
      %s479 = smul.addr %s478, 8
      %s480 = scalar_lea.vmem %s0, %s479
      %p481 = pneg %p48
      %p482 = pneg %p45
      %p483 = scmp.lt.s32.totalorder %s27, 1
      %s484 = scalar_select %p483, %s27, 1
      %s485 = smul.addr %s484, 2
      %s486 = smul.addr %s485, 8
      %s487 = scalar_lea.vmem %s1, %s486
      %p488 = pneg %p74
      %p489 = pneg %p71
      %p490 = pneg %p95
      %p491 = pneg %p92
      %p492 = pneg %p116
      %p493 = pneg %p113
      %p494 = pneg %p137
      %p495 = pneg %p134
      %p496 = pneg %p158
      %p497 = pneg %p155
      %p498 = pneg %p179
      %p499 = pneg %p176
      %p500 = pneg %p200
      %p501 = pneg %p197
      %p502 = pneg %p221
      %p503 = pneg %p218
      %p504 = pneg %p242
      %p505 = pneg %p239
      %p506 = pneg %p263
      %p507 = pneg %p260
      %p508 = pneg %p284
      %p509 = pneg %p281
      %p510 = pneg %p305
      %p511 = pneg %p302
      %p512 = pneg %p326
      %p513 = pneg %p323
      %p514 = pneg %p347
      %p515 = pneg %p344
      %p516 = pneg %p368
      %p517 = pneg %p365
      %p518 = pneg %p394
      %p519 = pneg %p391
      %p520 = scmp.lt.s32.totalorder %s27, 1
      %s521 = scalar_select %p520, %s27, 1
      %s522 = smul.addr %s521, 2
      %s523 = smul.addr %s522, 4
      %s524 = scalar_lea.vmem %s16, %s523
      %p525 = scmp.lt.s32.totalorder %s27, 1
      %s526 = scalar_select %p525, %s27, 1
      %s527 = smul.addr %s526, 8
      %s528 = scalar_lea.vmem %s0, %s527
      %p529 = scmp.lt.s32.totalorder %s27, 1
      %s530 = scalar_select %p529, %s27, 1
      %s531 = smul.addr %s530, 2
      %s532 = smul.addr %s531, 8
      %s533 = scalar_lea.vmem %s1, %s532
      %p534 = scmp.lt.s32.totalorder %s27, 1
      %s535 = scalar_select %p534, %s27, 1
      %s536 = smul.addr %s535, 2
      %s537 = smul.addr %s536, 4
      %s538 = scalar_lea.vmem %s16, %s537
      %v539 = vld [vmem:[%s528] sm:$0xff]
      %v540 = vld [vmem:[%s2] sm:$0xff]
      %v541 = vld [vmem:[%s2 + $0x8] sm:$0xff]
      %v542 = vld [vmem:[%s2 + $0x10] sm:$0xff]
      %v543 = vld [vmem:[%s2 + $0x18] sm:$0xff]
      %v544 = vld [vmem:[%s2 + $0x20] sm:$0xff]
      %v545 = vld [vmem:[%s2 + $0x28] sm:$0xff]
      %v546 = vld [vmem:[%s2 + $0x30] sm:$0xff]
      %v547 = vld [vmem:[%s2 + $0x38] sm:$0xff]
      %v548 = vld [vmem:[%s2 + $0x40] sm:$0xff]
      %v549 = vld [vmem:[%s2 + $0x48] sm:$0xff]
      %v550 = vld [vmem:[%s2 + $0x50] sm:$0xff]
      %v551 = vld [vmem:[%s2 + $0x58] sm:$0xff]
      %v552 = vld [vmem:[%s2 + $0x60] sm:$0xff]
      %v553 = vld [vmem:[%s2 + $0x68] sm:$0xff]
      %v554 = vld [vmem:[%s2 + $0x70] sm:$0xff]
      %v555 = vld [vmem:[%s2 + $0x78] sm:$0xff]
      %v556 = vld [vmem:[%s2 + $0x80] sm:$0xff]
      %v557 = vld [vmem:[%s2 + $0x88] sm:$0xff]
      %v558 = vld [vmem:[%s2 + $0x90] sm:$0xff]
      %v559 = vld [vmem:[%s2 + $0x98] sm:$0xff]
      %v560 = vld [vmem:[%s2 + $0xa0] sm:$0xff]
      %v561 = vld [vmem:[%s2 + $0xa8] sm:$0xff]
      %v562 = vld [vmem:[%s2 + $0xb0] sm:$0xff]
      %v563 = vld [vmem:[%s2 + $0xb8] sm:$0xff]
      %v564 = vld [vmem:[%s2 + $0xc0] sm:$0xff]
      %v565 = vld [vmem:[%s2 + $0xc8] sm:$0xff]
      %v566 = vld [vmem:[%s2 + $0xd0] sm:$0xff]
      %v567 = vld [vmem:[%s2 + $0xd8] sm:$0xff]
      %v568 = vld [vmem:[%s2 + $0xe0] sm:$0xff]
      %v569 = vld [vmem:[%s2 + $0xe8] sm:$0xff]
      %v570 = vld [vmem:[%s2 + $0xf0] sm:$0xff]
      %v571 = vld [vmem:[%s2 + $0xf8] sm:$0xff]
      %v572 = vld [vmem:[%s3] sm:$0xff]
      %v573 = vld [vmem:[%s3 + $0x8] sm:$0xff]
      %v574 = vld [vmem:[%s3 + $0x10] sm:$0xff]
      %v575 = vld [vmem:[%s3 + $0x18] sm:$0xff]
      %v576 = vld [vmem:[%s3 + $0x20] sm:$0xff]
      %v577 = vld [vmem:[%s3 + $0x28] sm:$0xff]
      %v578 = vld [vmem:[%s3 + $0x30] sm:$0xff]
      %v579 = vld [vmem:[%s3 + $0x38] sm:$0xff]
      %v580 = vld [vmem:[%s3 + $0x40] sm:$0xff]
      %v581 = vld [vmem:[%s3 + $0x48] sm:$0xff]
      %v582 = vld [vmem:[%s3 + $0x50] sm:$0xff]
      %v583 = vld [vmem:[%s3 + $0x58] sm:$0xff]
      %v584 = vld [vmem:[%s3 + $0x60] sm:$0xff]
      %v585 = vld [vmem:[%s3 + $0x68] sm:$0xff]
      %v586 = vld [vmem:[%s3 + $0x70] sm:$0xff]
      %v587 = vld [vmem:[%s3 + $0x78] sm:$0xff]
      %v588 = vld [vmem:[%s3 + $0x80] sm:$0xff]
      %v589 = vld [vmem:[%s3 + $0x88] sm:$0xff]
      %v590 = vld [vmem:[%s3 + $0x90] sm:$0xff]
      %v591 = vld [vmem:[%s3 + $0x98] sm:$0xff]
      %v592 = vld [vmem:[%s3 + $0xa0] sm:$0xff]
      %v593 = vld [vmem:[%s3 + $0xa8] sm:$0xff]
      %v594 = vld [vmem:[%s3 + $0xb0] sm:$0xff]
      %v595 = vld [vmem:[%s3 + $0xb8] sm:$0xff]
      %v596 = vld [vmem:[%s3 + $0xc0] sm:$0xff]
      %v597 = vld [vmem:[%s3 + $0xc8] sm:$0xff]
      %v598 = vld [vmem:[%s3 + $0xd0] sm:$0xff]
      %v599 = vld [vmem:[%s3 + $0xd8] sm:$0xff]
      %v600 = vld [vmem:[%s3 + $0xe0] sm:$0xff]
      %v601 = vld [vmem:[%s3 + $0xe8] sm:$0xff]
      %v602 = vld [vmem:[%s3 + $0xf0] sm:$0xff]
      %v603 = vld [vmem:[%s3 + $0xf8] sm:$0xff]
      %vm604 = vcmask 64512
      %v606 = vsel %vm604, %v540, 0
      %v609 = vsel %vm604, %v541, 0
      %v612 = vsel %vm604, %v542, 0
      %v615 = vsel %vm604, %v543, 0
      %v618 = vsel %vm604, %v544, 0
      %v621 = vsel %vm604, %v545, 0
      %v624 = vsel %vm604, %v546, 0
      %v627 = vsel %vm604, %v547, 0
      %v630 = vsel %vm604, %v548, 0
      %v633 = vsel %vm604, %v549, 0
      %v636 = vsel %vm604, %v550, 0
      %v639 = vsel %vm604, %v551, 0
      %v642 = vsel %vm604, %v552, 0
      %v645 = vsel %vm604, %v553, 0
      %v648 = vsel %vm604, %v554, 0
      %v651 = vsel %vm604, %v555, 0
      %v654 = vsel %vm604, %v556, 0
      %v657 = vsel %vm604, %v557, 0
      %v660 = vsel %vm604, %v558, 0
      %v663 = vsel %vm604, %v559, 0
      %v666 = vsel %vm604, %v560, 0
      %v669 = vsel %vm604, %v561, 0
      %v672 = vsel %vm604, %v562, 0
      %v675 = vsel %vm604, %v563, 0
      %v678 = vsel %vm604, %v564, 0
      %v681 = vsel %vm604, %v565, 0
      %v684 = vsel %vm604, %v566, 0
      %v687 = vsel %vm604, %v567, 0
      %v690 = vsel %vm604, %v568, 0
      %v693 = vsel %vm604, %v569, 0
      %v696 = vsel %vm604, %v570, 0
      %v699 = vsel %vm604, %v571, 0
      %701 = vmatprep.subr.mxu0 0.0
      %702 = vmatpush1.msra.mxu0 %v539
      %703 = vmatprep.subr.mxu0 0.0
      %704 = vmatpush1.msra.mxu0 0.0
      %705 = vmatprep.subr.mxu0 0.0
      %706 = vmatpush1.msra.mxu0 0.0
      %707 = vmatprep.subr.mxu0 0.0
      %708 = vmatpush1.msra.mxu0 0.0
      %709 = vmatprep.subr.mxu0 0.0
      %710 = vmatpush1.msra.mxu0 0.0
      %711 = vmatprep.subr.mxu0 0.0
      %712 = vmatpush1.msra.mxu0 0.0
      %713 = vmatprep.subr.mxu0 0.0
      %714 = vmatpush1.msra.mxu0 0.0
      %715 = vmatprep.subr.mxu0 0.0
      %716 = vmatpush1.msra.mxu0 0.0
      %717 = vmatprep.subr.mxu0 0.0
      %718 = vmatpush1.msra.mxu0 0.0
      %719 = vmatprep.subr.mxu0 0.0
      %720 = vmatpush1.msra.mxu0 0.0
      %721 = vmatprep.subr.mxu0 0.0
      %722 = vmatpush1.msra.mxu0 0.0
      %723 = vmatprep.subr.mxu0 0.0
      %724 = vmatpush1.msra.mxu0 0.0
      %725 = vmatprep.subr.mxu0 0.0
      %726 = vmatpush1.msra.mxu0 0.0
      %727 = vmatprep.subr.mxu0 0.0
      %728 = vmatpush1.msra.mxu0 0.0
      %729 = vmatprep.subr.mxu0 0.0
      %730 = vmatpush1.msra.mxu0 0.0
      %731 = vmatprep.subr.mxu0 0.0
      %732 = vmatpush1.msra.mxu0 0.0
      %733 = vmatprep.subr.mxu0 0.0
      %734 = vmatpush1.msra.mxu0 0.0
      %735 = vmatprep.subr.mxu0 0.0
      %736 = vmatpush1.msra.mxu0 0.0
      %737 = vmatprep.subr.mxu0 0.0
      %738 = vmatpush1.msra.mxu0 0.0
      %739 = vmatprep.subr.mxu0 0.0
      %740 = vmatpush1.msra.mxu0 0.0
      %741 = vmatprep.subr.mxu0 0.0
      %742 = vmatpush1.msra.mxu0 0.0
      %743 = vmatprep.subr.mxu0 0.0
      %744 = vmatpush1.msra.mxu0 0.0
      %745 = vmatprep.subr.mxu0 0.0
      %746 = vmatpush1.msra.mxu0 0.0
      %747 = vmatprep.subr.mxu0 0.0
      %748 = vmatpush1.msra.mxu0 0.0
      %749 = vmatprep.subr.mxu0 0.0
      %750 = vmatpush1.msra.mxu0 0.0
      %751 = vmatprep.subr.mxu0 0.0
      %752 = vmatpush1.msra.mxu0 0.0
      %753 = vmatprep.subr.mxu0 0.0
      %754 = vmatpush1.msra.mxu0 0.0
      %755 = vmatprep.subr.mxu0 0.0
      %756 = vmatpush1.msra.mxu0 0.0
      %757 = vmatprep.subr.mxu0 0.0
      %758 = vmatpush1.msra.mxu0 0.0
      %759 = vmatprep.subr.mxu0 0.0
      %760 = vmatpush1.msra.mxu0 0.0
      %761 = vmatprep.subr.mxu0 0.0
      %762 = vmatpush1.msra.mxu0 0.0
      %763 = vmatprep.subr.mxu0 0.0
      %764 = vmatpush1.msra.mxu0 0.0
      %765 = vmatprep.mubr.f32.mxu0 0.0
      %766 = vmatmul.mubr.f32.gmra.mrb[0].mxu0 %v606
      %v767 = vpop.f32.mrb[0].mxu0
      %v768 = vadd.f32 %v572, %v767
      %v769 = vpop.f32.mrb[0].mxu0
      %770 = vmatprep.mubr.f32.mxu0 0.0
      %771 = vmatmul.mubr.f32.gmra.mrb[0].mxu0 %v609
      %v772 = vpop.f32.mrb[0].mxu0
      %v773 = vadd.f32 %v573, %v772
      %v774 = vpop.f32.mrb[0].mxu0
      %775 = vmatprep.mubr.f32.mxu0 0.0
      %776 = vmatmul.mubr.f32.gmra.mrb[0].mxu0 %v612
      %v777 = vpop.f32.mrb[0].mxu0
      %v778 = vadd.f32 %v574, %v777
      %v779 = vpop.f32.mrb[0].mxu0
      %780 = vmatprep.mubr.f32.mxu0 0.0
      %781 = vmatmul.mubr.f32.gmra.mrb[0].mxu0 %v615
      %v782 = vpop.f32.mrb[0].mxu0
      %v783 = vadd.f32 %v575, %v782
      %v784 = vpop.f32.mrb[0].mxu0
      %785 = vmatprep.mubr.f32.mxu0 0.0
      %786 = vmatmul.mubr.f32.gmra.mrb[0].mxu0 %v618
      %v787 = vpop.f32.mrb[0].mxu0
      %v788 = vadd.f32 %v576, %v787
      %v789 = vpop.f32.mrb[0].mxu0
      %790 = vmatprep.mubr.f32.mxu0 0.0
      %791 = vmatmul.mubr.f32.gmra.mrb[0].mxu0 %v621
      %v792 = vpop.f32.mrb[0].mxu0
      %v793 = vadd.f32 %v577, %v792
      %v794 = vpop.f32.mrb[0].mxu0
      %795 = vmatprep.mubr.f32.mxu0 0.0
      %796 = vmatmul.mubr.f32.gmra.mrb[0].mxu0 %v624
      %v797 = vpop.f32.mrb[0].mxu0
      %v798 = vadd.f32 %v578, %v797
      %v799 = vpop.f32.mrb[0].mxu0
      %800 = vmatprep.mubr.f32.mxu0 0.0
      %801 = vmatmul.mubr.f32.gmra.mrb[0].mxu0 %v627
      %v802 = vpop.f32.mrb[0].mxu0
      %v803 = vadd.f32 %v579, %v802
      %v804 = vpop.f32.mrb[0].mxu0
      %805 = vmatprep.mubr.f32.mxu0 0.0
      %806 = vmatmul.mubr.f32.gmra.mrb[0].mxu0 %v630
      %v807 = vpop.f32.mrb[0].mxu0
      %v808 = vadd.f32 %v580, %v807
      %v809 = vpop.f32.mrb[0].mxu0
      %810 = vmatprep.mubr.f32.mxu0 0.0
      %811 = vmatmul.mubr.f32.gmra.mrb[0].mxu0 %v633
      %v812 = vpop.f32.mrb[0].mxu0
      %v813 = vadd.f32 %v581, %v812
      %v814 = vpop.f32.mrb[0].mxu0
      %815 = vmatprep.mubr.f32.mxu0 0.0
      %816 = vmatmul.mubr.f32.gmra.mrb[0].mxu0 %v636
      %v817 = vpop.f32.mrb[0].mxu0
      %v818 = vadd.f32 %v582, %v817
      %v819 = vpop.f32.mrb[0].mxu0
      %820 = vmatprep.mubr.f32.mxu0 0.0
      %821 = vmatmul.mubr.f32.gmra.mrb[0].mxu0 %v639
      %v822 = vpop.f32.mrb[0].mxu0
      %v823 = vadd.f32 %v583, %v822
      %v824 = vpop.f32.mrb[0].mxu0
      %825 = vmatprep.mubr.f32.mxu0 0.0
      %826 = vmatmul.mubr.f32.gmra.mrb[0].mxu0 %v642
      %v827 = vpop.f32.mrb[0].mxu0
      %v828 = vadd.f32 %v584, %v827
      %v829 = vpop.f32.mrb[0].mxu0
      %830 = vmatprep.mubr.f32.mxu0 0.0
      %831 = vmatmul.mubr.f32.gmra.mrb[0].mxu0 %v645
      %v832 = vpop.f32.mrb[0].mxu0
      %v833 = vadd.f32 %v585, %v832
      %v834 = vpop.f32.mrb[0].mxu0
      %835 = vmatprep.mubr.f32.mxu0 0.0
      %836 = vmatmul.mubr.f32.gmra.mrb[0].mxu0 %v648
      %v837 = vpop.f32.mrb[0].mxu0
      %v838 = vadd.f32 %v586, %v837
      %v839 = vpop.f32.mrb[0].mxu0
      %840 = vmatprep.mubr.f32.mxu0 0.0
      %841 = vmatmul.mubr.f32.gmra.mrb[0].mxu0 %v651
      %v842 = vpop.f32.mrb[0].mxu0
      %v843 = vadd.f32 %v587, %v842
      %v844 = vpop.f32.mrb[0].mxu0
      %845 = vmatprep.mubr.f32.mxu0 0.0
      %846 = vmatmul.mubr.f32.gmra.mrb[0].mxu0 %v654
      %v847 = vpop.f32.mrb[0].mxu0
      %v848 = vadd.f32 %v588, %v847
      %v849 = vpop.f32.mrb[0].mxu0
      %850 = vmatprep.mubr.f32.mxu0 0.0
      %851 = vmatmul.mubr.f32.gmra.mrb[0].mxu0 %v657
      %v852 = vpop.f32.mrb[0].mxu0
      %v853 = vadd.f32 %v589, %v852
      %v854 = vpop.f32.mrb[0].mxu0
      %855 = vmatprep.mubr.f32.mxu0 0.0
      %856 = vmatmul.mubr.f32.gmra.mrb[0].mxu0 %v660
      %v857 = vpop.f32.mrb[0].mxu0
      %v858 = vadd.f32 %v590, %v857
      %v859 = vpop.f32.mrb[0].mxu0
      %860 = vmatprep.mubr.f32.mxu0 0.0
      %861 = vmatmul.mubr.f32.gmra.mrb[0].mxu0 %v663
      %v862 = vpop.f32.mrb[0].mxu0
      %v863 = vadd.f32 %v591, %v862
      %v864 = vpop.f32.mrb[0].mxu0
      %865 = vmatprep.mubr.f32.mxu0 0.0
      %866 = vmatmul.mubr.f32.gmra.mrb[0].mxu0 %v666
      %v867 = vpop.f32.mrb[0].mxu0
      %v868 = vadd.f32 %v592, %v867
      %v869 = vpop.f32.mrb[0].mxu0
      %870 = vmatprep.mubr.f32.mxu0 0.0
      %871 = vmatmul.mubr.f32.gmra.mrb[0].mxu0 %v669
      %v872 = vpop.f32.mrb[0].mxu0
      %v873 = vadd.f32 %v593, %v872
      %v874 = vpop.f32.mrb[0].mxu0
      %875 = vmatprep.mubr.f32.mxu0 0.0
      %876 = vmatmul.mubr.f32.gmra.mrb[0].mxu0 %v672
      %v877 = vpop.f32.mrb[0].mxu0
      %v878 = vadd.f32 %v594, %v877
      %v879 = vpop.f32.mrb[0].mxu0
      %880 = vmatprep.mubr.f32.mxu0 0.0
      %881 = vmatmul.mubr.f32.gmra.mrb[0].mxu0 %v675
      %v882 = vpop.f32.mrb[0].mxu0
      %v883 = vadd.f32 %v595, %v882
      %v884 = vpop.f32.mrb[0].mxu0
      %885 = vmatprep.mubr.f32.mxu0 0.0
      %886 = vmatmul.mubr.f32.gmra.mrb[0].mxu0 %v678
      %v887 = vpop.f32.mrb[0].mxu0
      %v888 = vadd.f32 %v596, %v887
      %v889 = vpop.f32.mrb[0].mxu0
      %890 = vmatprep.mubr.f32.mxu0 0.0
      %891 = vmatmul.mubr.f32.gmra.mrb[0].mxu0 %v681
      %v892 = vpop.f32.mrb[0].mxu0
      %v893 = vadd.f32 %v597, %v892
      %v894 = vpop.f32.mrb[0].mxu0
      %895 = vmatprep.mubr.f32.mxu0 0.0
      %896 = vmatmul.mubr.f32.gmra.mrb[0].mxu0 %v684
      %v897 = vpop.f32.mrb[0].mxu0
      %v898 = vadd.f32 %v598, %v897
      %v899 = vpop.f32.mrb[0].mxu0
      %900 = vmatprep.mubr.f32.mxu0 0.0
      %901 = vmatmul.mubr.f32.gmra.mrb[0].mxu0 %v687
      %v902 = vpop.f32.mrb[0].mxu0
      %v903 = vadd.f32 %v599, %v902
      %v904 = vpop.f32.mrb[0].mxu0
      %905 = vmatprep.mubr.f32.mxu0 0.0
      %906 = vmatmul.mubr.f32.gmra.mrb[0].mxu0 %v690
      %v907 = vpop.f32.mrb[0].mxu0
      %v908 = vadd.f32 %v600, %v907
      %v909 = vpop.f32.mrb[0].mxu0
      %910 = vmatprep.mubr.f32.mxu0 0.0
      %911 = vmatmul.mubr.f32.gmra.mrb[0].mxu0 %v693
      %v912 = vpop.f32.mrb[0].mxu0
      %v913 = vadd.f32 %v601, %v912
      %v914 = vpop.f32.mrb[0].mxu0
      %915 = vmatprep.mubr.f32.mxu0 0.0
      %916 = vmatmul.mubr.f32.gmra.mrb[0].mxu0 %v696
      %v917 = vpop.f32.mrb[0].mxu0
      %v918 = vadd.f32 %v602, %v917
      %v919 = vpop.f32.mrb[0].mxu0
      %920 = vmatprep.mubr.f32.mxu0 0.0
      %921 = vmatmul.mubr.f32.gmra.mrb[0].mxu0 %v699
      %v922 = vpop.f32.mrb[0].mxu0
      %v923 = vadd.f32 %v603, %v922
      %v924 = vpop.f32.mrb[0].mxu0
      %925 = vdwg.mxu0
      %v926 = vmax.f32 %v768, 0.0
      %v927 = vmax.f32 %v773, 0.0
      %v928 = vmax.f32 %v778, 0.0
      %v929 = vmax.f32 %v783, 0.0
      %v930 = vmax.f32 %v788, 0.0
      %v931 = vmax.f32 %v793, 0.0
      %v932 = vmax.f32 %v798, 0.0
      %v933 = vmax.f32 %v803, 0.0
      %v934 = vmax.f32 %v808, 0.0
      %v935 = vmax.f32 %v813, 0.0
      %v936 = vmax.f32 %v818, 0.0
      %v937 = vmax.f32 %v823, 0.0
      %v938 = vmax.f32 %v828, 0.0
      %v939 = vmax.f32 %v833, 0.0
      %v940 = vmax.f32 %v838, 0.0
      %v941 = vmax.f32 %v843, 0.0
      %v942 = vmax.f32 %v848, 0.0
      %v943 = vmax.f32 %v853, 0.0
      %v944 = vmax.f32 %v858, 0.0
      %v945 = vmax.f32 %v863, 0.0
      %v946 = vmax.f32 %v868, 0.0
      %v947 = vmax.f32 %v873, 0.0
      %v948 = vmax.f32 %v878, 0.0
      %v949 = vmax.f32 %v883, 0.0
      %v950 = vmax.f32 %v888, 0.0
      %v951 = vmax.f32 %v893, 0.0
      %v952 = vmax.f32 %v898, 0.0
      %v953 = vmax.f32 %v903, 0.0
      %v954 = vmax.f32 %v908, 0.0
      %v955 = vmax.f32 %v913, 0.0
      %v956 = vmax.f32 %v918, 0.0
      %v957 = vmax.f32 %v923, 0.0
      %v958 = vld [vmem:[%s4] sm:$0xff]
      %v959 = vld [vmem:[%s4 + $0x8] sm:$0xff]
      %v960 = vld [vmem:[%s4 + $0x10] sm:$0xff]
      %v961 = vld [vmem:[%s4 + $0x18] sm:$0xff]
      %v962 = vld [vmem:[%s4 + $0x20] sm:$0xff]
      %v963 = vld [vmem:[%s4 + $0x28] sm:$0xff]
      %v964 = vld [vmem:[%s4 + $0x30] sm:$0xff]
      %v965 = vld [vmem:[%s4 + $0x38] sm:$0xff]
      %v966 = vld [vmem:[%s4 + $0x40] sm:$0xff]
      %v967 = vld [vmem:[%s4 + $0x48] sm:$0xff]
      %v968 = vld [vmem:[%s4 + $0x50] sm:$0xff]
      %v969 = vld [vmem:[%s4 + $0x58] sm:$0xff]
      %v970 = vld [vmem:[%s4 + $0x60] sm:$0xff]
      %v971 = vld [vmem:[%s4 + $0x68] sm:$0xff]
      %v972 = vld [vmem:[%s4 + $0x70] sm:$0xff]
      %v973 = vld [vmem:[%s4 + $0x78] sm:$0xff]
      %v974 = vld [vmem:[%s4 + $0x80] sm:$0xff]
      %v975 = vld [vmem:[%s4 + $0x88] sm:$0xff]
      %v976 = vld [vmem:[%s4 + $0x90] sm:$0xff]
      %v977 = vld [vmem:[%s4 + $0x98] sm:$0xff]
      %v978 = vld [vmem:[%s4 + $0xa0] sm:$0xff]
      %v979 = vld [vmem:[%s4 + $0xa8] sm:$0xff]
      %v980 = vld [vmem:[%s4 + $0xb0] sm:$0xff]
      %v981 = vld [vmem:[%s4 + $0xb8] sm:$0xff]
      %v982 = vld [vmem:[%s4 + $0xc0] sm:$0xff]
      %v983 = vld [vmem:[%s4 + $0xc8] sm:$0xff]
      %v984 = vld [vmem:[%s4 + $0xd0] sm:$0xff]
      %v985 = vld [vmem:[%s4 + $0xd8] sm:$0xff]
      %v986 = vld [vmem:[%s4 + $0xe0] sm:$0xff]
      %v987 = vld [vmem:[%s4 + $0xe8] sm:$0xff]
      %v988 = vld [vmem:[%s4 + $0xf0] sm:$0xff]
      %v989 = vld [vmem:[%s4 + $0xf8] sm:$0xff]
      %v990 = vld [vmem:[%s4 + $0x100] sm:$0xff]
      %v991 = vld [vmem:[%s4 + $0x108] sm:$0xff]
      %v992 = vld [vmem:[%s4 + $0x110] sm:$0xff]
      %v993 = vld [vmem:[%s4 + $0x118] sm:$0xff]
      %v994 = vld [vmem:[%s4 + $0x120] sm:$0xff]
      %v995 = vld [vmem:[%s4 + $0x128] sm:$0xff]
      %v996 = vld [vmem:[%s4 + $0x130] sm:$0xff]
      %v997 = vld [vmem:[%s4 + $0x138] sm:$0xff]
      %v998 = vld [vmem:[%s4 + $0x140] sm:$0xff]
      %v999 = vld [vmem:[%s4 + $0x148] sm:$0xff]
      %v1000 = vld [vmem:[%s4 + $0x150] sm:$0xff]
      %v1001 = vld [vmem:[%s4 + $0x158] sm:$0xff]
      %v1002 = vld [vmem:[%s4 + $0x160] sm:$0xff]
      %v1003 = vld [vmem:[%s4 + $0x168] sm:$0xff]
      %v1004 = vld [vmem:[%s4 + $0x170] sm:$0xff]
      %v1005 = vld [vmem:[%s4 + $0x178] sm:$0xff]
      %v1006 = vld [vmem:[%s4 + $0x180] sm:$0xff]
      %v1007 = vld [vmem:[%s4 + $0x188] sm:$0xff]
      %v1008 = vld [vmem:[%s4 + $0x190] sm:$0xff]
      %v1009 = vld [vmem:[%s4 + $0x198] sm:$0xff]
      %v1010 = vld [vmem:[%s4 + $0x1a0] sm:$0xff]
      %v1011 = vld [vmem:[%s4 + $0x1a8] sm:$0xff]
      %v1012 = vld [vmem:[%s4 + $0x1b0] sm:$0xff]
      %v1013 = vld [vmem:[%s4 + $0x1b8] sm:$0xff]
      %v1014 = vld [vmem:[%s4 + $0x1c0] sm:$0xff]
      %v1015 = vld [vmem:[%s4 + $0x1c8] sm:$0xff]
      %v1016 = vld [vmem:[%s4 + $0x1d0] sm:$0xff]
      %v1017 = vld [vmem:[%s4 + $0x1d8] sm:$0xff]
      %v1018 = vld [vmem:[%s4 + $0x1e0] sm:$0xff]
      %v1019 = vld [vmem:[%s4 + $0x1e8] sm:$0xff]
      %v1020 = vld [vmem:[%s4 + $0x1f0] sm:$0xff]
      %v1021 = vld [vmem:[%s4 + $0x1f8] sm:$0xff]
      %v1022 = vld [vmem:[%s5] sm:$0xff]
      %v1023 = vld [vmem:[%s5 + $0x8] sm:$0xff]
      %v1024 = vld [vmem:[%s5 + $0x10] sm:$0xff]
      %v1025 = vld [vmem:[%s5 + $0x18] sm:$0xff]
      %v1026 = vld [vmem:[%s5 + $0x20] sm:$0xff]
      %v1027 = vld [vmem:[%s5 + $0x28] sm:$0xff]
      %v1028 = vld [vmem:[%s5 + $0x30] sm:$0xff]
      %v1029 = vld [vmem:[%s5 + $0x38] sm:$0xff]
      %v1030 = vld [vmem:[%s5 + $0x40] sm:$0xff]
      %v1031 = vld [vmem:[%s5 + $0x48] sm:$0xff]
      %v1032 = vld [vmem:[%s5 + $0x50] sm:$0xff]
      %v1033 = vld [vmem:[%s5 + $0x58] sm:$0xff]
      %v1034 = vld [vmem:[%s5 + $0x60] sm:$0xff]
      %v1035 = vld [vmem:[%s5 + $0x68] sm:$0xff]
      %v1036 = vld [vmem:[%s5 + $0x70] sm:$0xff]
      %v1037 = vld [vmem:[%s5 + $0x78] sm:$0xff]
      %v1038 = vld [vmem:[%s5 + $0x80] sm:$0xff]
      %v1039 = vld [vmem:[%s5 + $0x88] sm:$0xff]
      %v1040 = vld [vmem:[%s5 + $0x90] sm:$0xff]
      %v1041 = vld [vmem:[%s5 + $0x98] sm:$0xff]
      %v1042 = vld [vmem:[%s5 + $0xa0] sm:$0xff]
      %v1043 = vld [vmem:[%s5 + $0xa8] sm:$0xff]
      %v1044 = vld [vmem:[%s5 + $0xb0] sm:$0xff]
      %v1045 = vld [vmem:[%s5 + $0xb8] sm:$0xff]
      %v1046 = vld [vmem:[%s5 + $0xc0] sm:$0xff]
      %v1047 = vld [vmem:[%s5 + $0xc8] sm:$0xff]
      %v1048 = vld [vmem:[%s5 + $0xd0] sm:$0xff]
      %v1049 = vld [vmem:[%s5 + $0xd8] sm:$0xff]
      %v1050 = vld [vmem:[%s5 + $0xe0] sm:$0xff]
      %v1051 = vld [vmem:[%s5 + $0xe8] sm:$0xff]
      %v1052 = vld [vmem:[%s5 + $0xf0] sm:$0xff]
      %v1053 = vld [vmem:[%s5 + $0xf8] sm:$0xff]
      %1054 = vmatprep.subr.mxu0 0.0
      %1055 = vmatpush1.msra.mxu0 %v926
      %1056 = vmatprep.subr.mxu0 0.0
      %1057 = vmatpush1.msra.mxu0 %v927
      %1058 = vmatprep.subr.mxu0 0.0
      %1059 = vmatpush1.msra.mxu0 %v928
      %1060 = vmatprep.subr.mxu0 0.0
      %1061 = vmatpush1.msra.mxu0 %v929
      %1062 = vmatprep.subr.mxu0 0.0
      %1063 = vmatpush1.msra.mxu0 %v930
      %1064 = vmatprep.subr.mxu0 0.0
      %1065 = vmatpush1.msra.mxu0 %v931
      %1066 = vmatprep.subr.mxu0 0.0
      %1067 = vmatpush1.msra.mxu0 %v932
      %1068 = vmatprep.subr.mxu0 0.0
      %1069 = vmatpush1.msra.mxu0 %v933
      %1070 = vmatprep.subr.mxu0 0.0
      %1071 = vmatpush1.msra.mxu0 %v934
      %1072 = vmatprep.subr.mxu0 0.0
      %1073 = vmatpush1.msra.mxu0 %v935
      %1074 = vmatprep.subr.mxu0 0.0
      %1075 = vmatpush1.msra.mxu0 %v936
      %1076 = vmatprep.subr.mxu0 0.0
      %1077 = vmatpush1.msra.mxu0 %v937
      %1078 = vmatprep.subr.mxu0 0.0
      %1079 = vmatpush1.msra.mxu0 %v938
      %1080 = vmatprep.subr.mxu0 0.0
      %1081 = vmatpush1.msra.mxu0 %v939
      %1082 = vmatprep.subr.mxu0 0.0
      %1083 = vmatpush1.msra.mxu0 %v940
      %1084 = vmatprep.subr.mxu0 0.0
      %1085 = vmatpush1.msra.mxu0 %v941
      %1086 = vmatprep.subr.mxu0 0.0
      %1087 = vmatpush1.msra.mxu0 %v942
      %1088 = vmatprep.subr.mxu0 0.0
      %1089 = vmatpush1.msra.mxu0 %v943
      %1090 = vmatprep.subr.mxu0 0.0
      %1091 = vmatpush1.msra.mxu0 %v944
      %1092 = vmatprep.subr.mxu0 0.0
      %1093 = vmatpush1.msra.mxu0 %v945
      %1094 = vmatprep.subr.mxu0 0.0
      %1095 = vmatpush1.msra.mxu0 %v946
      %1096 = vmatprep.subr.mxu0 0.0
      %1097 = vmatpush1.msra.mxu0 %v947
      %1098 = vmatprep.subr.mxu0 0.0
      %1099 = vmatpush1.msra.mxu0 %v948
      %1100 = vmatprep.subr.mxu0 0.0
      %1101 = vmatpush1.msra.mxu0 %v949
      %1102 = vmatprep.subr.mxu0 0.0
      %1103 = vmatpush1.msra.mxu0 %v950
      %1104 = vmatprep.subr.mxu0 0.0
      %1105 = vmatpush1.msra.mxu0 %v951
      %1106 = vmatprep.subr.mxu0 0.0
      %1107 = vmatpush1.msra.mxu0 %v952
      %1108 = vmatprep.subr.mxu0 0.0
      %1109 = vmatpush1.msra.mxu0 %v953
      %1110 = vmatprep.subr.mxu0 0.0
      %1111 = vmatpush1.msra.mxu0 %v954
      %1112 = vmatprep.subr.mxu0 0.0
      %1113 = vmatpush1.msra.mxu0 %v955
      %1114 = vmatprep.subr.mxu0 0.0
      %1115 = vmatpush1.msra.mxu0 %v956
      %1116 = vmatprep.subr.mxu0 0.0
      %1117 = vmatpush1.msra.mxu0 %v957
      %1118 = vmatprep.mubr.f32.mxu0 %v959
      %1119 = vmatmul.mubr.f32.gmra.mrb[0].mxu0 %v958
      %v1120 = vpop.f32.mrb[0].mxu0
      %v1121 = vadd.f32 %v1022, %v1120
      %v1122 = vpop.f32.mrb[0].mxu0
      %1123 = vmatprep.mubr.f32.mxu0 %v961
      %1124 = vmatmul.mubr.f32.gmra.mrb[0].mxu0 %v960
      %v1125 = vpop.f32.mrb[0].mxu0
      %v1126 = vadd.f32 %v1023, %v1125
      %v1127 = vpop.f32.mrb[0].mxu0
      %1128 = vmatprep.mubr.f32.mxu0 %v963
      %1129 = vmatmul.mubr.f32.gmra.mrb[0].mxu0 %v962
      %v1130 = vpop.f32.mrb[0].mxu0
      %v1131 = vadd.f32 %v1024, %v1130
      %v1132 = vpop.f32.mrb[0].mxu0
      %1133 = vmatprep.mubr.f32.mxu0 %v965
      %1134 = vmatmul.mubr.f32.gmra.mrb[0].mxu0 %v964
      %v1135 = vpop.f32.mrb[0].mxu0
      %v1136 = vadd.f32 %v1025, %v1135
      %v1137 = vpop.f32.mrb[0].mxu0
      %1138 = vmatprep.mubr.f32.mxu0 %v967
      %1139 = vmatmul.mubr.f32.gmra.mrb[0].mxu0 %v966
      %v1140 = vpop.f32.mrb[0].mxu0
      %v1141 = vadd.f32 %v1026, %v1140
      %v1142 = vpop.f32.mrb[0].mxu0
      %1143 = vmatprep.mubr.f32.mxu0 %v969
      %1144 = vmatmul.mubr.f32.gmra.mrb[0].mxu0 %v968
      %v1145 = vpop.f32.mrb[0].mxu0
      %v1146 = vadd.f32 %v1027, %v1145
      %v1147 = vpop.f32.mrb[0].mxu0
      %1148 = vmatprep.mubr.f32.mxu0 %v971
      %1149 = vmatmul.mubr.f32.gmra.mrb[0].mxu0 %v970
      %v1150 = vpop.f32.mrb[0].mxu0
      %v1151 = vadd.f32 %v1028, %v1150
      %v1152 = vpop.f32.mrb[0].mxu0
      %1153 = vmatprep.mubr.f32.mxu0 %v973
      %1154 = vmatmul.mubr.f32.gmra.mrb[0].mxu0 %v972
      %v1155 = vpop.f32.mrb[0].mxu0
      %v1156 = vadd.f32 %v1029, %v1155
      %v1157 = vpop.f32.mrb[0].mxu0
      %1158 = vmatprep.mubr.f32.mxu0 %v975
      %1159 = vmatmul.mubr.f32.gmra.mrb[0].mxu0 %v974
      %v1160 = vpop.f32.mrb[0].mxu0
      %v1161 = vadd.f32 %v1030, %v1160
      %v1162 = vpop.f32.mrb[0].mxu0
      %1163 = vmatprep.mubr.f32.mxu0 %v977
      %1164 = vmatmul.mubr.f32.gmra.mrb[0].mxu0 %v976
      %v1165 = vpop.f32.mrb[0].mxu0
      %v1166 = vadd.f32 %v1031, %v1165
      %v1167 = vpop.f32.mrb[0].mxu0
      %1168 = vmatprep.mubr.f32.mxu0 %v979
      %1169 = vmatmul.mubr.f32.gmra.mrb[0].mxu0 %v978
      %v1170 = vpop.f32.mrb[0].mxu0
      %v1171 = vadd.f32 %v1032, %v1170
      %v1172 = vpop.f32.mrb[0].mxu0
      %1173 = vmatprep.mubr.f32.mxu0 %v981
      %1174 = vmatmul.mubr.f32.gmra.mrb[0].mxu0 %v980
      %v1175 = vpop.f32.mrb[0].mxu0
      %v1176 = vadd.f32 %v1033, %v1175
      %v1177 = vpop.f32.mrb[0].mxu0
      %1178 = vmatprep.mubr.f32.mxu0 %v983
      %1179 = vmatmul.mubr.f32.gmra.mrb[0].mxu0 %v982
      %v1180 = vpop.f32.mrb[0].mxu0
      %v1181 = vadd.f32 %v1034, %v1180
      %v1182 = vpop.f32.mrb[0].mxu0
      %1183 = vmatprep.mubr.f32.mxu0 %v985
      %1184 = vmatmul.mubr.f32.gmra.mrb[0].mxu0 %v984
      %v1185 = vpop.f32.mrb[0].mxu0
      %v1186 = vadd.f32 %v1035, %v1185
      %v1187 = vpop.f32.mrb[0].mxu0
      %1188 = vmatprep.mubr.f32.mxu0 %v987
      %1189 = vmatmul.mubr.f32.gmra.mrb[0].mxu0 %v986
      %v1190 = vpop.f32.mrb[0].mxu0
      %v1191 = vadd.f32 %v1036, %v1190
      %v1192 = vpop.f32.mrb[0].mxu0
      %1193 = vmatprep.mubr.f32.mxu0 %v989
      %1194 = vmatmul.mubr.f32.gmra.mrb[0].mxu0 %v988
      %v1195 = vpop.f32.mrb[0].mxu0
      %v1196 = vadd.f32 %v1037, %v1195
      %v1197 = vpop.f32.mrb[0].mxu0
      %1198 = vmatprep.mubr.f32.mxu0 %v991
      %1199 = vmatmul.mubr.f32.gmra.mrb[0].mxu0 %v990
      %v1200 = vpop.f32.mrb[0].mxu0
      %v1201 = vadd.f32 %v1038, %v1200
      %v1202 = vpop.f32.mrb[0].mxu0
      %1203 = vmatprep.mubr.f32.mxu0 %v993
      %1204 = vmatmul.mubr.f32.gmra.mrb[0].mxu0 %v992
      %v1205 = vpop.f32.mrb[0].mxu0
      %v1206 = vadd.f32 %v1039, %v1205
      %v1207 = vpop.f32.mrb[0].mxu0
      %1208 = vmatprep.mubr.f32.mxu0 %v995
      %1209 = vmatmul.mubr.f32.gmra.mrb[0].mxu0 %v994
      %v1210 = vpop.f32.mrb[0].mxu0
      %v1211 = vadd.f32 %v1040, %v1210
      %v1212 = vpop.f32.mrb[0].mxu0
      %1213 = vmatprep.mubr.f32.mxu0 %v997
      %1214 = vmatmul.mubr.f32.gmra.mrb[0].mxu0 %v996
      %v1215 = vpop.f32.mrb[0].mxu0
      %v1216 = vadd.f32 %v1041, %v1215
      %v1217 = vpop.f32.mrb[0].mxu0
      %1218 = vmatprep.mubr.f32.mxu0 %v999
      %1219 = vmatmul.mubr.f32.gmra.mrb[0].mxu0 %v998
      %v1220 = vpop.f32.mrb[0].mxu0
      %v1221 = vadd.f32 %v1042, %v1220
      %v1222 = vpop.f32.mrb[0].mxu0
      %1223 = vmatprep.mubr.f32.mxu0 %v1001
      %1224 = vmatmul.mubr.f32.gmra.mrb[0].mxu0 %v1000
      %v1225 = vpop.f32.mrb[0].mxu0
      %v1226 = vadd.f32 %v1043, %v1225
      %v1227 = vpop.f32.mrb[0].mxu0
      %1228 = vmatprep.mubr.f32.mxu0 %v1003
      %1229 = vmatmul.mubr.f32.gmra.mrb[0].mxu0 %v1002
      %v1230 = vpop.f32.mrb[0].mxu0
      %v1231 = vadd.f32 %v1044, %v1230
      %v1232 = vpop.f32.mrb[0].mxu0
      %1233 = vmatprep.mubr.f32.mxu0 %v1005
      %1234 = vmatmul.mubr.f32.gmra.mrb[0].mxu0 %v1004
      %v1235 = vpop.f32.mrb[0].mxu0
      %v1236 = vadd.f32 %v1045, %v1235
      %v1237 = vpop.f32.mrb[0].mxu0
      %1238 = vmatprep.mubr.f32.mxu0 %v1007
      %1239 = vmatmul.mubr.f32.gmra.mrb[0].mxu0 %v1006
      %v1240 = vpop.f32.mrb[0].mxu0
      %v1241 = vadd.f32 %v1046, %v1240
      %v1242 = vpop.f32.mrb[0].mxu0
      %1243 = vmatprep.mubr.f32.mxu0 %v1009
      %1244 = vmatmul.mubr.f32.gmra.mrb[0].mxu0 %v1008
      %v1245 = vpop.f32.mrb[0].mxu0
      %v1246 = vadd.f32 %v1047, %v1245
      %v1247 = vpop.f32.mrb[0].mxu0
      %1248 = vmatprep.mubr.f32.mxu0 %v1011
      %1249 = vmatmul.mubr.f32.gmra.mrb[0].mxu0 %v1010
      %v1250 = vpop.f32.mrb[0].mxu0
      %v1251 = vadd.f32 %v1048, %v1250
      %v1252 = vpop.f32.mrb[0].mxu0
      %1253 = vmatprep.mubr.f32.mxu0 %v1013
      %1254 = vmatmul.mubr.f32.gmra.mrb[0].mxu0 %v1012
      %v1255 = vpop.f32.mrb[0].mxu0
      %v1256 = vadd.f32 %v1049, %v1255
      %v1257 = vpop.f32.mrb[0].mxu0
      %1258 = vmatprep.mubr.f32.mxu0 %v1015
      %1259 = vmatmul.mubr.f32.gmra.mrb[0].mxu0 %v1014
      %v1260 = vpop.f32.mrb[0].mxu0
      %v1261 = vadd.f32 %v1050, %v1260
      %v1262 = vpop.f32.mrb[0].mxu0
      %1263 = vmatprep.mubr.f32.mxu0 %v1017
      %1264 = vmatmul.mubr.f32.gmra.mrb[0].mxu0 %v1016
      %v1265 = vpop.f32.mrb[0].mxu0
      %v1266 = vadd.f32 %v1051, %v1265
      %v1267 = vpop.f32.mrb[0].mxu0
      %1268 = vmatprep.mubr.f32.mxu0 %v1019
      %1269 = vmatmul.mubr.f32.gmra.mrb[0].mxu0 %v1018
      %v1270 = vpop.f32.mrb[0].mxu0
      %v1271 = vadd.f32 %v1052, %v1270
      %v1272 = vpop.f32.mrb[0].mxu0
      %1273 = vmatprep.mubr.f32.mxu0 %v1021
      %1274 = vmatmul.mubr.f32.gmra.mrb[0].mxu0 %v1020
      %v1275 = vpop.f32.mrb[0].mxu0
      %v1276 = vadd.f32 %v1053, %v1275
      %v1277 = vpop.f32.mrb[0].mxu0
      %1278 = vdwg.mxu0
      %v1279 = vmax.f32 %v1121, 0.0
      %v1280 = vmax.f32 %v1126, 0.0
      %v1281 = vmax.f32 %v1131, 0.0
      %v1282 = vmax.f32 %v1136, 0.0
      %v1283 = vmax.f32 %v1141, 0.0
      %v1284 = vmax.f32 %v1146, 0.0
      %v1285 = vmax.f32 %v1151, 0.0
      %v1286 = vmax.f32 %v1156, 0.0
      %v1287 = vmax.f32 %v1161, 0.0
      %v1288 = vmax.f32 %v1166, 0.0
      %v1289 = vmax.f32 %v1171, 0.0
      %v1290 = vmax.f32 %v1176, 0.0
      %v1291 = vmax.f32 %v1181, 0.0
      %v1292 = vmax.f32 %v1186, 0.0
      %v1293 = vmax.f32 %v1191, 0.0
      %v1294 = vmax.f32 %v1196, 0.0
      %v1295 = vmax.f32 %v1201, 0.0
      %v1296 = vmax.f32 %v1206, 0.0
      %v1297 = vmax.f32 %v1211, 0.0
      %v1298 = vmax.f32 %v1216, 0.0
      %v1299 = vmax.f32 %v1221, 0.0
      %v1300 = vmax.f32 %v1226, 0.0
      %v1301 = vmax.f32 %v1231, 0.0
      %v1302 = vmax.f32 %v1236, 0.0
      %v1303 = vmax.f32 %v1241, 0.0
      %v1304 = vmax.f32 %v1246, 0.0
      %v1305 = vmax.f32 %v1251, 0.0
      %v1306 = vmax.f32 %v1256, 0.0
      %v1307 = vmax.f32 %v1261, 0.0
      %v1308 = vmax.f32 %v1266, 0.0
      %v1309 = vmax.f32 %v1271, 0.0
      %v1310 = vmax.f32 %v1276, 0.0
      %v1311 = vld [vmem:[%s6] sm:$0xff]
      %v1312 = vld [vmem:[%s6 + $0x8] sm:$0xff]
      %v1313 = vld [vmem:[%s6 + $0x10] sm:$0xff]
      %v1314 = vld [vmem:[%s6 + $0x18] sm:$0xff]
      %v1315 = vld [vmem:[%s6 + $0x20] sm:$0xff]
      %v1316 = vld [vmem:[%s6 + $0x28] sm:$0xff]
      %v1317 = vld [vmem:[%s6 + $0x30] sm:$0xff]
      %v1318 = vld [vmem:[%s6 + $0x38] sm:$0xff]
      %v1319 = vld [vmem:[%s6 + $0x40] sm:$0xff]
      %v1320 = vld [vmem:[%s6 + $0x48] sm:$0xff]
      %v1321 = vld [vmem:[%s6 + $0x50] sm:$0xff]
      %v1322 = vld [vmem:[%s6 + $0x58] sm:$0xff]
      %v1323 = vld [vmem:[%s7] sm:$0xff]
      %v1324 = vld [vmem:[%s7 + $0x8] sm:$0xff]
      %v1325 = vld [vmem:[%s7 + $0x10] sm:$0xff]
      %v1326 = vld [vmem:[%s7 + $0x18] sm:$0xff]
      %v1327 = vld [vmem:[%s7 + $0x20] sm:$0xff]
      %v1328 = vld [vmem:[%s7 + $0x28] sm:$0xff]
      %1329 = vmatprep.subr.mxu0 0.0
      %1330 = vmatpush1.msra.mxu0 %v1279
      %1331 = vmatprep.subr.mxu0 0.0
      %1332 = vmatpush1.msra.mxu0 %v1280
      %1333 = vmatprep.subr.mxu0 0.0
      %1334 = vmatpush1.msra.mxu0 %v1281
      %1335 = vmatprep.subr.mxu0 0.0
      %1336 = vmatpush1.msra.mxu0 %v1282
      %1337 = vmatprep.subr.mxu0 0.0
      %1338 = vmatpush1.msra.mxu0 %v1283
      %1339 = vmatprep.subr.mxu0 0.0
      %1340 = vmatpush1.msra.mxu0 %v1284
      %1341 = vmatprep.subr.mxu0 0.0
      %1342 = vmatpush1.msra.mxu0 %v1285
      %1343 = vmatprep.subr.mxu0 0.0
      %1344 = vmatpush1.msra.mxu0 %v1286
      %1345 = vmatprep.subr.mxu0 0.0
      %1346 = vmatpush1.msra.mxu0 %v1287
      %1347 = vmatprep.subr.mxu0 0.0
      %1348 = vmatpush1.msra.mxu0 %v1288
      %1349 = vmatprep.subr.mxu0 0.0
      %1350 = vmatpush1.msra.mxu0 %v1289
      %1351 = vmatprep.subr.mxu0 0.0
      %1352 = vmatpush1.msra.mxu0 %v1290
      %1353 = vmatprep.subr.mxu0 0.0
      %1354 = vmatpush1.msra.mxu0 %v1291
      %1355 = vmatprep.subr.mxu0 0.0
      %1356 = vmatpush1.msra.mxu0 %v1292
      %1357 = vmatprep.subr.mxu0 0.0
      %1358 = vmatpush1.msra.mxu0 %v1293
      %1359 = vmatprep.subr.mxu0 0.0
      %1360 = vmatpush1.msra.mxu0 %v1294
      %1361 = vmatprep.subr.mxu0 0.0
      %1362 = vmatpush1.msra.mxu0 %v1295
      %1363 = vmatprep.subr.mxu0 0.0
      %1364 = vmatpush1.msra.mxu0 %v1296
      %1365 = vmatprep.subr.mxu0 0.0
      %1366 = vmatpush1.msra.mxu0 %v1297
      %1367 = vmatprep.subr.mxu0 0.0
      %1368 = vmatpush1.msra.mxu0 %v1298
      %1369 = vmatprep.subr.mxu0 0.0
      %1370 = vmatpush1.msra.mxu0 %v1299
      %1371 = vmatprep.subr.mxu0 0.0
      %1372 = vmatpush1.msra.mxu0 %v1300
      %1373 = vmatprep.subr.mxu0 0.0
      %1374 = vmatpush1.msra.mxu0 %v1301
      %1375 = vmatprep.subr.mxu0 0.0
      %1376 = vmatpush1.msra.mxu0 %v1302
      %1377 = vmatprep.subr.mxu0 0.0
      %1378 = vmatpush1.msra.mxu0 %v1303
      %1379 = vmatprep.subr.mxu0 0.0
      %1380 = vmatpush1.msra.mxu0 %v1304
      %1381 = vmatprep.subr.mxu0 0.0
      %1382 = vmatpush1.msra.mxu0 %v1305
      %1383 = vmatprep.subr.mxu0 0.0
      %1384 = vmatpush1.msra.mxu0 %v1306
      %1385 = vmatprep.subr.mxu0 0.0
      %1386 = vmatpush1.msra.mxu0 %v1307
      %1387 = vmatprep.subr.mxu0 0.0
      %1388 = vmatpush1.msra.mxu0 %v1308
      %1389 = vmatprep.subr.mxu0 0.0
      %1390 = vmatpush1.msra.mxu0 %v1309
      %1391 = vmatprep.subr.mxu0 0.0
      %1392 = vmatpush1.msra.mxu0 %v1310
      %1393 = vmatprep.mubr.f32.mxu0 %v1312
      %1394 = vmatmul.mubr.f32.gmra.mrb[0].mxu0 %v1311
      %v1395 = vpop.f32.mrb[0].mxu0
      %v1396 = vadd.f32 %v1323, %v1395
      %v1397 = vpop.f32.mrb[0].mxu0
      %1398 = vmatprep.mubr.f32.mxu0 %v1314
      %1399 = vmatmul.mubr.f32.gmra.mrb[0].mxu0 %v1313
      %v1400 = vpop.f32.mrb[0].mxu0
      %v1401 = vadd.f32 %v1324, %v1400
      %v1402 = vpop.f32.mrb[0].mxu0
      %1403 = vmatprep.mubr.f32.mxu0 %v1316
      %1404 = vmatmul.mubr.f32.gmra.mrb[0].mxu0 %v1315
      %v1405 = vpop.f32.mrb[0].mxu0
      %v1406 = vadd.f32 %v1325, %v1405
      %v1407 = vpop.f32.mrb[0].mxu0
      %1408 = vmatprep.mubr.f32.mxu0 %v1318
      %1409 = vmatmul.mubr.f32.gmra.mrb[0].mxu0 %v1317
      %v1410 = vpop.f32.mrb[0].mxu0
      %v1411 = vadd.f32 %v1326, %v1410
      %v1412 = vpop.f32.mrb[0].mxu0
      %1413 = vmatprep.mubr.f32.mxu0 %v1320
      %1414 = vmatmul.mubr.f32.gmra.mrb[0].mxu0 %v1319
      %v1415 = vpop.f32.mrb[0].mxu0
      %v1416 = vadd.f32 %v1327, %v1415
      %v1417 = vpop.f32.mrb[0].mxu0
      %1418 = vmatprep.mubr.f32.mxu0 %v1322
      %1419 = vmatmul.mubr.f32.gmra.mrb[0].mxu0 %v1321
      %v1420 = vpop.f32.mrb[0].mxu0
      %v1421 = vadd.f32 %v1328, %v1420
      %v1422 = vpop.f32.mrb[0].mxu0
      %1423 = vdwg.mxu0
      %v1424 = vmax.f32 %v1396, 0.0
      %v1425 = vmax.f32 %v1401, 0.0
      %v1426 = vmax.f32 %v1406, 0.0
      %v1427 = vmax.f32 %v1411, 0.0
      %v1428 = vmax.f32 %v1416, 0.0
      %v1429 = vmax.f32 %v1421, 0.0
      %1430 = vst [vmem:[#allocation2] sm:$0xff] 0.0
      %1431 = vst [vmem:[#allocation2 + $0x8] sm:$0xff] 0.0
      %1432 = vst [vmem:[#allocation2 + $0x10] sm:$0xff] 0.0
      %1433 = vst [vmem:[#allocation2 + $0x18] sm:$0xff] 0.0
      %v1434 = vld [vmem:[%s533] sm:$0xff]
      %v1435 = vld [vmem:[%s533 + $0x8] sm:$0xff]
      %1436 = vst [vmem:[#allocation2 + $0x8] sm:$0xff] %v1434
      %1437 = vst [vmem:[#allocation2 + $0x10] sm:$0xff] %v1435
      %v1438 = vlaneseq
      %v1439 = vand.u32 %v1438, 127
      %v1440 = vadd.s32 %v1439, 128
      %vm1441 = vcmp.lt.s32.totalorder %v1439, 0
      %v1442 = vsub.s32 0, %v1439
      %v1443 = vsel %vm1441, %v1442, %v1439
      %v1444 = vshrl.u32 %v1443, 4
      %v1445 = vand.u32 %v1443, 15
      %v1446 = vsub.s32 0, %v1445
      %v1447 = vsel %vm1441, %v1446, %v1445
      %vm1448 = vcmp.lt.s32.totalorder %v1440, 0
      %v1449 = vsub.s32 0, %v1440
      %v1450 = vsel %vm1448, %v1449, %v1440
      %v1451 = vshrl.u32 %v1450, 4
      %v1452 = vand.u32 %v1450, 15
      %v1453 = vsub.s32 0, %v1452
      %v1454 = vsel %vm1448, %v1453, %v1452
      %vm1455 = vcmp.ne.s32.totalorder %v1447, 0
      %vm1456 = vcmp.ne.s32.totalorder %v1454, 0
      %vm1457 = vcmp.lt.s32.totalorder %v1447, 0
      %vm1458 = vcmp.lt.s32.totalorder %v1454, 0
      %vm1459 = vmand %vm1457, %vm1455
      %vm1460 = vmand %vm1458, %vm1456
      %v1461 = vadd.s32 %v1447, 16
      %v1462 = vadd.s32 %v1454, 16
      %v1463 = vsel %vm1459, %v1461, %v1447
      %v1464 = vsel %vm1460, %v1462, %v1454
      %vm1465 = vcmp.ge.s32.totalorder %v1463, 1
      %vm1466 = vcmp.ge.s32.totalorder %v1464, 1
      %vm1467 = vcmp.le.s32.totalorder %v1463, 14
      %vm1468 = vcmp.le.s32.totalorder %v1464, 14
      %v1469 = vld [vmem:[#allocation2] sm:$0xff]
      %v1470 = vld [vmem:[#allocation2 + $0x8] sm:$0xff]
      %v1471 = vld [vmem:[#allocation2 + $0x10] sm:$0xff]
      %v1472 = vld [vmem:[#allocation2 + $0x18] sm:$0xff]
      %1476 = vrot.lane.b32.xlu0 %v1469, 17
      %v1477 = vpop.permute.xlu0 %1476
      %1478 = vrot.lane.b32.xlu0 %v1470, 17
      %v1479 = vpop.permute.xlu0 %1478
      %1480 = vrot.lane.b32.xlu0 %v1471, 17
      %v1481 = vpop.permute.xlu0 %1480
      %vm1482 = vcmask 138240
      %v1483 = vsel %vm1482, %v1477, %v1479
      %v1484 = vsel %vm1482, %v1479, %v1481
      %v1487 = vsel %vm1465, %v1483, 0.0
      %v1488 = vsel %vm1466, %v1484, 0.0
      %1489 = vrot.lane.b32.xlu0 %v1469, 15
      %v1490 = vpop.permute.xlu0 %1489
      %1491 = vrot.lane.b32.xlu0 %v1470, 15
      %v1492 = vpop.permute.xlu0 %1491
      %1493 = vrot.lane.b32.xlu0 %v1471, 15
      %v1494 = vpop.permute.xlu0 %1493
      %vm1495 = vcmask 121856
      %v1496 = vsel %vm1495, %v1490, %v1492
      %v1497 = vsel %vm1495, %v1492, %v1494
      %v1500 = vsel %vm1467, %v1496, 0.0
      %v1501 = vsel %vm1468, %v1497, 0.0
      %1502 = vrot.lane.b32.xlu0 %v1469, 1
      %v1503 = vpop.permute.xlu0 %1502
      %1504 = vrot.lane.b32.xlu0 %v1470, 1
      %v1505 = vpop.permute.xlu0 %1504
      %1506 = vrot.lane.b32.xlu0 %v1471, 1
      %v1507 = vpop.permute.xlu0 %1506
      %vm1508 = vcmask 7168
      %v1509 = vsel %vm1508, %v1503, %v1505
      %v1510 = vsel %vm1508, %v1505, %v1507
      %v1513 = vsel %vm1465, %v1509, 0.0
      %v1514 = vsel %vm1466, %v1510, 0.0
      %1516 = vrot.lane.b32.xlu0 %v1470, 127
      %v1517 = vpop.permute.xlu0 %1516
      %1518 = vrot.lane.b32.xlu0 %v1471, 127
      %v1519 = vpop.permute.xlu0 %1518
      %1520 = vrot.lane.b32.xlu0 %v1472, 127
      %v1521 = vpop.permute.xlu0 %1520
      %vm1522 = vcmask 1039360
      %v1523 = vsel %vm1522, %v1517, %v1519
      %v1524 = vsel %vm1522, %v1519, %v1521
      %v1527 = vsel %vm1467, %v1523, 0.0
      %v1528 = vsel %vm1468, %v1524, 0.0
      %1529 = vrot.lane.b32.xlu0 %v1470, 113
      %v1530 = vpop.permute.xlu0 %1529
      %1531 = vrot.lane.b32.xlu0 %v1471, 113
      %v1532 = vpop.permute.xlu0 %1531
      %1533 = vrot.lane.b32.xlu0 %v1472, 113
      %v1534 = vpop.permute.xlu0 %1533
      %vm1535 = vcmask 924672
      %v1536 = vsel %vm1535, %v1530, %v1532
      %v1537 = vsel %vm1535, %v1532, %v1534
      %v1540 = vsel %vm1465, %v1536, 0.0
      %v1541 = vsel %vm1466, %v1537, 0.0
      %1542 = vrot.lane.b32.xlu0 %v1470, 111
      %v1543 = vpop.permute.xlu0 %1542
      %1544 = vrot.lane.b32.xlu0 %v1471, 111
      %v1545 = vpop.permute.xlu0 %1544
      %1546 = vrot.lane.b32.xlu0 %v1472, 111
      %v1547 = vpop.permute.xlu0 %1546
      %vm1548 = vcmask 908288
      %v1549 = vsel %vm1548, %v1543, %v1545
      %v1550 = vsel %vm1548, %v1545, %v1547
      %v1553 = vsel %vm1467, %v1549, 0.0
      %v1554 = vsel %vm1468, %v1550, 0.0
      %1555 = vrot.lane.b32.xlu0 %v1469, 16
      %v1556 = vpop.permute.xlu0 %1555
      %1557 = vrot.lane.b32.xlu0 %v1470, 16
      %v1558 = vpop.permute.xlu0 %1557
      %1559 = vrot.lane.b32.xlu0 %v1471, 16
      %v1560 = vpop.permute.xlu0 %1559
      %vm1561 = vcmask 130048
      %v1562 = vsel %vm1561, %v1556, %v1558
      %v1563 = vsel %vm1561, %v1558, %v1560
      %1566 = vrot.lane.b32.xlu0 %v1470, 112
      %v1567 = vpop.permute.xlu0 %1566
      %1568 = vrot.lane.b32.xlu0 %v1471, 112
      %v1569 = vpop.permute.xlu0 %1568
      %1570 = vrot.lane.b32.xlu0 %v1472, 112
      %v1571 = vpop.permute.xlu0 %1570
      %vm1572 = vcmask 916480
      %v1573 = vsel %vm1572, %v1567, %v1569
      %v1574 = vsel %vm1572, %v1569, %v1571
      %v1577 = vld [vmem:[%s8] sm:$0xff]
      %v1578 = vld [vmem:[%s9] sm:$0xff]
      %1580 = vset.pattern.permute.xlu0 0
      %1581 = vperm.xlu0 %1580, %v1578
      %v1582 = vpop.permute.xlu0 %1581
      %vm1584 = vcmask 588800
      %v1586 = vsel %vm1584, %v1577, 0
      %1588 = vmatprep.subr.mxu0 %v1488
      %1589 = vmatpush1.msra.mxu0 %v1487
      %1590 = vmatprep.subr.mxu0 %v1563
      %1591 = vmatpush1.msra.mxu0 %v1562
      %1592 = vmatprep.subr.mxu0 %v1501
      %1593 = vmatpush1.msra.mxu0 %v1500
      %1594 = vmatprep.subr.mxu0 %v1514
      %1595 = vmatpush1.msra.mxu0 %v1513
      %1596 = vmatprep.subr.mxu0 %v1471
      %1597 = vmatpush1.msra.mxu0 %v1470
      %1598 = vmatprep.subr.mxu0 %v1528
      %1599 = vmatpush1.msra.mxu0 %v1527
      %1600 = vmatprep.subr.mxu0 %v1541
      %1601 = vmatpush1.msra.mxu0 %v1540
      %1602 = vmatprep.subr.mxu0 %v1574
      %1603 = vmatpush1.msra.mxu0 %v1573
      %1604 = vmatprep.subr.mxu0 %v1554
      %1605 = vmatpush1.msra.mxu0 %v1553
      %1606 = vmatprep.subr.mxu0 0.0
      %1607 = vmatpush1.msra.mxu0 0.0
      %1608 = vmatprep.subr.mxu0 0.0
      %1609 = vmatpush1.msra.mxu0 0.0
      %1610 = vmatprep.subr.mxu0 0.0
      %1611 = vmatpush1.msra.mxu0 0.0
      %1612 = vmatprep.subr.mxu0 0.0
      %1613 = vmatpush1.msra.mxu0 0.0
      %1614 = vmatprep.subr.mxu0 0.0
      %1615 = vmatpush1.msra.mxu0 0.0
      %1616 = vmatprep.subr.mxu0 0.0
      %1617 = vmatpush1.msra.mxu0 0.0
      %1618 = vmatprep.subr.mxu0 0.0
      %1619 = vmatpush1.msra.mxu0 0.0
      %1620 = vmatprep.subr.mxu0 0.0
      %1621 = vmatpush1.msra.mxu0 0.0
      %1622 = vmatprep.subr.mxu0 0.0
      %1623 = vmatpush1.msra.mxu0 0.0
      %1624 = vmatprep.subr.mxu0 0.0
      %1625 = vmatpush1.msra.mxu0 0.0
      %1626 = vmatprep.subr.mxu0 0.0
      %1627 = vmatpush1.msra.mxu0 0.0
      %1628 = vmatprep.subr.mxu0 0.0
      %1629 = vmatpush1.msra.mxu0 0.0
      %1630 = vmatprep.subr.mxu0 0.0
      %1631 = vmatpush1.msra.mxu0 0.0
      %1632 = vmatprep.subr.mxu0 0.0
      %1633 = vmatpush1.msra.mxu0 0.0
      %1634 = vmatprep.subr.mxu0 0.0
      %1635 = vmatpush1.msra.mxu0 0.0
      %1636 = vmatprep.subr.mxu0 0.0
      %1637 = vmatpush1.msra.mxu0 0.0
      %1638 = vmatprep.subr.mxu0 0.0
      %1639 = vmatpush1.msra.mxu0 0.0
      %1640 = vmatprep.subr.mxu0 0.0
      %1641 = vmatpush1.msra.mxu0 0.0
      %1642 = vmatprep.subr.mxu0 0.0
      %1643 = vmatpush1.msra.mxu0 0.0
      %1644 = vmatprep.subr.mxu0 0.0
      %1645 = vmatpush1.msra.mxu0 0.0
      %1646 = vmatprep.subr.mxu0 0.0
      %1647 = vmatpush1.msra.mxu0 0.0
      %1648 = vmatprep.subr.mxu0 0.0
      %1649 = vmatpush1.msra.mxu0 0.0
      %1650 = vmatprep.subr.mxu0 0.0
      %1651 = vmatpush1.msra.mxu0 0.0
      %1652 = vmatprep.mubr.f32.mxu0 0.0
      %1653 = vmatmul.mubr.f32.gmra.mrb[0].mxu0 %v1586
      %v1654 = vpop.f32.mrb[0].mxu0
      %v1655 = vadd.f32 %v1582, %v1654
      %v1656 = vpop.f32.mrb[0].mxu0
      %v1657 = vadd.f32 %v1582, %v1656
      %1658 = vdwg.mxu0
      %v1659 = vadd.f32 %v1655, %v1657
      %1660 = vadd.xlane.f32.xlu0 %v1659
      %v1661 = vpop.xlane.xlu0 %1660
      %v1662 = vrcp.pop 256.0
      %v1663 = vmul.f32 %v1661, %v1662
      %v1664 = vsub.f32 %v1655, %v1663
      %v1665 = vsub.f32 %v1657, %v1663
      %v1666 = vmul.f32 %v1664, %v1664
      %v1667 = vmul.f32 %v1665, %v1665
      %v1668 = vadd.f32 %v1666, %v1667
      %1669 = vadd.xlane.f32.xlu0 %v1668
      %v1670 = vpop.xlane.xlu0 %1669
      %v1671 = vmul.f32 %v1670, %v1662
      %v1672 = vadd.f32 %v1671, 1e-05
      %v1673 = vrsqrt.pop %v1672
      %v1674 = vmul.f32 %v1425, %v1673
      %1676 = vset.pattern.permute.xlu0 0
      %1677 = vperm.xlu0 %1676, %v1674
      %v1678 = vpop.permute.xlu0 %1677
      %v1680 = vmul.f32 %v1664, %v1678
      %v1681 = vmul.f32 %v1665, %v1678
      %1683 = vset.pattern.permute.xlu0 0
      %1684 = vperm.xlu0 %1683, %v1424
      %v1685 = vpop.permute.xlu0 %1684
      %v1687 = vadd.f32 %v1680, %v1685
      %v1688 = vadd.f32 %v1681, %v1685
      %1689 = vst [vmem:[#allocation2 + $0x8] sm:$0xff] %v1687
      %1690 = vst [vmem:[#allocation2 + $0x10] sm:$0xff] %v1688
      %v1691 = vld [vmem:[#allocation2] sm:$0xff]
      %v1692 = vld [vmem:[#allocation2 + $0x8] sm:$0xff]
      %v1693 = vld [vmem:[#allocation2 + $0x10] sm:$0xff]
      %v1694 = vld [vmem:[#allocation2 + $0x18] sm:$0xff]
      %1698 = vrot.lane.b32.xlu0 %v1691, 17
      %v1699 = vpop.permute.xlu0 %1698
      %1700 = vrot.lane.b32.xlu0 %v1692, 17
      %v1701 = vpop.permute.xlu0 %1700
      %1702 = vrot.lane.b32.xlu0 %v1693, 17
      %v1703 = vpop.permute.xlu0 %1702
      %v1704 = vsel %vm1482, %v1699, %v1701
      %v1705 = vsel %vm1482, %v1701, %v1703
      %v1708 = vsel %vm1465, %v1704, 0.0
      %v1709 = vsel %vm1466, %v1705, 0.0
      %1710 = vrot.lane.b32.xlu0 %v1691, 15
      %v1711 = vpop.permute.xlu0 %1710
      %1712 = vrot.lane.b32.xlu0 %v1692, 15
      %v1713 = vpop.permute.xlu0 %1712
      %1714 = vrot.lane.b32.xlu0 %v1693, 15
      %v1715 = vpop.permute.xlu0 %1714
      %v1716 = vsel %vm1495, %v1711, %v1713
      %v1717 = vsel %vm1495, %v1713, %v1715
      %v1720 = vsel %vm1467, %v1716, 0.0
      %v1721 = vsel %vm1468, %v1717, 0.0
      %1722 = vrot.lane.b32.xlu0 %v1691, 1
      %v1723 = vpop.permute.xlu0 %1722
      %1724 = vrot.lane.b32.xlu0 %v1692, 1
      %v1725 = vpop.permute.xlu0 %1724
      %1726 = vrot.lane.b32.xlu0 %v1693, 1
      %v1727 = vpop.permute.xlu0 %1726
      %v1728 = vsel %vm1508, %v1723, %v1725
      %v1729 = vsel %vm1508, %v1725, %v1727
      %v1732 = vsel %vm1465, %v1728, 0.0
      %v1733 = vsel %vm1466, %v1729, 0.0
      %1735 = vrot.lane.b32.xlu0 %v1692, 127
      %v1736 = vpop.permute.xlu0 %1735
      %1737 = vrot.lane.b32.xlu0 %v1693, 127
      %v1738 = vpop.permute.xlu0 %1737
      %1739 = vrot.lane.b32.xlu0 %v1694, 127
      %v1740 = vpop.permute.xlu0 %1739
      %v1741 = vsel %vm1522, %v1736, %v1738
      %v1742 = vsel %vm1522, %v1738, %v1740
      %v1745 = vsel %vm1467, %v1741, 0.0
      %v1746 = vsel %vm1468, %v1742, 0.0
      %1747 = vrot.lane.b32.xlu0 %v1692, 113
      %v1748 = vpop.permute.xlu0 %1747
      %1749 = vrot.lane.b32.xlu0 %v1693, 113
      %v1750 = vpop.permute.xlu0 %1749
      %1751 = vrot.lane.b32.xlu0 %v1694, 113
      %v1752 = vpop.permute.xlu0 %1751
      %v1753 = vsel %vm1535, %v1748, %v1750
      %v1754 = vsel %vm1535, %v1750, %v1752
      %v1757 = vsel %vm1465, %v1753, 0.0
      %v1758 = vsel %vm1466, %v1754, 0.0
      %1759 = vrot.lane.b32.xlu0 %v1692, 111
      %v1760 = vpop.permute.xlu0 %1759
      %1761 = vrot.lane.b32.xlu0 %v1693, 111
      %v1762 = vpop.permute.xlu0 %1761
      %1763 = vrot.lane.b32.xlu0 %v1694, 111
      %v1764 = vpop.permute.xlu0 %1763
      %v1765 = vsel %vm1548, %v1760, %v1762
      %v1766 = vsel %vm1548, %v1762, %v1764
      %v1769 = vsel %vm1467, %v1765, 0.0
      %v1770 = vsel %vm1468, %v1766, 0.0
      %1771 = vrot.lane.b32.xlu0 %v1691, 16
      %v1772 = vpop.permute.xlu0 %1771
      %1773 = vrot.lane.b32.xlu0 %v1692, 16
      %v1774 = vpop.permute.xlu0 %1773
      %1775 = vrot.lane.b32.xlu0 %v1693, 16
      %v1776 = vpop.permute.xlu0 %1775
      %v1777 = vsel %vm1561, %v1772, %v1774
      %v1778 = vsel %vm1561, %v1774, %v1776
      %1781 = vrot.lane.b32.xlu0 %v1692, 112
      %v1782 = vpop.permute.xlu0 %1781
      %1783 = vrot.lane.b32.xlu0 %v1693, 112
      %v1784 = vpop.permute.xlu0 %1783
      %1785 = vrot.lane.b32.xlu0 %v1694, 112
      %v1786 = vpop.permute.xlu0 %1785
      %v1787 = vsel %vm1572, %v1782, %v1784
      %v1788 = vsel %vm1572, %v1784, %v1786
      %v1791 = vld [vmem:[%s10] sm:$0xff]
      %v1792 = vld [vmem:[%s11] sm:$0xff]
      %1794 = vset.pattern.permute.xlu0 0
      %1795 = vperm.xlu0 %1794, %v1792
      %v1796 = vpop.permute.xlu0 %1795
      %v1799 = vsel %vm1584, %v1791, 0
      %1801 = vmatprep.subr.mxu0 %v1709
      %1802 = vmatpush1.msra.mxu0 %v1708
      %1803 = vmatprep.subr.mxu0 %v1778
      %1804 = vmatpush1.msra.mxu0 %v1777
      %1805 = vmatprep.subr.mxu0 %v1721
      %1806 = vmatpush1.msra.mxu0 %v1720
      %1807 = vmatprep.subr.mxu0 %v1733
      %1808 = vmatpush1.msra.mxu0 %v1732
      %1809 = vmatprep.subr.mxu0 %v1693
      %1810 = vmatpush1.msra.mxu0 %v1692
      %1811 = vmatprep.subr.mxu0 %v1746
      %1812 = vmatpush1.msra.mxu0 %v1745
      %1813 = vmatprep.subr.mxu0 %v1758
      %1814 = vmatpush1.msra.mxu0 %v1757
      %1815 = vmatprep.subr.mxu0 %v1788
      %1816 = vmatpush1.msra.mxu0 %v1787
      %1817 = vmatprep.subr.mxu0 %v1770
      %1818 = vmatpush1.msra.mxu0 %v1769
      %1819 = vmatprep.subr.mxu0 0.0
      %1820 = vmatpush1.msra.mxu0 0.0
      %1821 = vmatprep.subr.mxu0 0.0
      %1822 = vmatpush1.msra.mxu0 0.0
      %1823 = vmatprep.subr.mxu0 0.0
      %1824 = vmatpush1.msra.mxu0 0.0
      %1825 = vmatprep.subr.mxu0 0.0
      %1826 = vmatpush1.msra.mxu0 0.0
      %1827 = vmatprep.subr.mxu0 0.0
      %1828 = vmatpush1.msra.mxu0 0.0
      %1829 = vmatprep.subr.mxu0 0.0
      %1830 = vmatpush1.msra.mxu0 0.0
      %1831 = vmatprep.subr.mxu0 0.0
      %1832 = vmatpush1.msra.mxu0 0.0
      %1833 = vmatprep.subr.mxu0 0.0
      %1834 = vmatpush1.msra.mxu0 0.0
      %1835 = vmatprep.subr.mxu0 0.0
      %1836 = vmatpush1.msra.mxu0 0.0
      %1837 = vmatprep.subr.mxu0 0.0
      %1838 = vmatpush1.msra.mxu0 0.0
      %1839 = vmatprep.subr.mxu0 0.0
      %1840 = vmatpush1.msra.mxu0 0.0
      %1841 = vmatprep.subr.mxu0 0.0
      %1842 = vmatpush1.msra.mxu0 0.0
      %1843 = vmatprep.subr.mxu0 0.0
      %1844 = vmatpush1.msra.mxu0 0.0
      %1845 = vmatprep.subr.mxu0 0.0
      %1846 = vmatpush1.msra.mxu0 0.0
      %1847 = vmatprep.subr.mxu0 0.0
      %1848 = vmatpush1.msra.mxu0 0.0
      %1849 = vmatprep.subr.mxu0 0.0
      %1850 = vmatpush1.msra.mxu0 0.0
      %1851 = vmatprep.subr.mxu0 0.0
      %1852 = vmatpush1.msra.mxu0 0.0
      %1853 = vmatprep.subr.mxu0 0.0
      %1854 = vmatpush1.msra.mxu0 0.0
      %1855 = vmatprep.subr.mxu0 0.0
      %1856 = vmatpush1.msra.mxu0 0.0
      %1857 = vmatprep.subr.mxu0 0.0
      %1858 = vmatpush1.msra.mxu0 0.0
      %1859 = vmatprep.subr.mxu0 0.0
      %1860 = vmatpush1.msra.mxu0 0.0
      %1861 = vmatprep.subr.mxu0 0.0
      %1862 = vmatpush1.msra.mxu0 0.0
      %1863 = vmatprep.subr.mxu0 0.0
      %1864 = vmatpush1.msra.mxu0 0.0
      %1865 = vmatprep.mubr.f32.mxu0 0.0
      %1866 = vmatmul.mubr.f32.gmra.mrb[0].mxu0 %v1799
      %v1867 = vpop.f32.mrb[0].mxu0
      %v1868 = vadd.f32 %v1796, %v1867
      %v1869 = vpop.f32.mrb[0].mxu0
      %v1870 = vadd.f32 %v1796, %v1869
      %1871 = vdwg.mxu0
      %v1872 = vadd.f32 %v1868, %v1870
      %1873 = vadd.xlane.f32.xlu0 %v1872
      %v1874 = vpop.xlane.xlu0 %1873
      %v1875 = vmul.f32 %v1874, %v1662
      %v1876 = vsub.f32 %v1868, %v1875
      %v1877 = vsub.f32 %v1870, %v1875
      %v1878 = vmul.f32 %v1876, %v1876
      %v1879 = vmul.f32 %v1877, %v1877
      %v1880 = vadd.f32 %v1878, %v1879
      %1881 = vadd.xlane.f32.xlu0 %v1880
      %v1882 = vpop.xlane.xlu0 %1881
      %v1883 = vmul.f32 %v1882, %v1662
      %v1884 = vadd.f32 %v1883, 1e-05
      %v1885 = vrsqrt.pop %v1884
      %v1886 = vmul.f32 %v1427, %v1885
      %1888 = vset.pattern.permute.xlu0 0
      %1889 = vperm.xlu0 %1888, %v1886
      %v1890 = vpop.permute.xlu0 %1889
      %v1892 = vmul.f32 %v1876, %v1890
      %v1893 = vmul.f32 %v1877, %v1890
      %1895 = vset.pattern.permute.xlu0 0
      %1896 = vperm.xlu0 %1895, %v1426
      %v1897 = vpop.permute.xlu0 %1896
      %v1899 = vadd.f32 %v1892, %v1897
      %v1900 = vadd.f32 %v1893, %v1897
      %1901 = vst [vmem:[#allocation2 + $0x8] sm:$0xff] %v1899
      %1902 = vst [vmem:[#allocation2 + $0x10] sm:$0xff] %v1900
      %v1903 = vld [vmem:[#allocation2] sm:$0xff]
      %v1904 = vld [vmem:[#allocation2 + $0x8] sm:$0xff]
      %v1905 = vld [vmem:[#allocation2 + $0x10] sm:$0xff]
      %v1906 = vld [vmem:[#allocation2 + $0x18] sm:$0xff]
      %1910 = vrot.lane.b32.xlu0 %v1903, 17
      %v1911 = vpop.permute.xlu0 %1910
      %1912 = vrot.lane.b32.xlu0 %v1904, 17
      %v1913 = vpop.permute.xlu0 %1912
      %1914 = vrot.lane.b32.xlu0 %v1905, 17
      %v1915 = vpop.permute.xlu0 %1914
      %v1916 = vsel %vm1482, %v1911, %v1913
      %v1917 = vsel %vm1482, %v1913, %v1915
      %v1920 = vsel %vm1465, %v1916, 0.0
      %v1921 = vsel %vm1466, %v1917, 0.0
      %1922 = vrot.lane.b32.xlu0 %v1903, 15
      %v1923 = vpop.permute.xlu0 %1922
      %1924 = vrot.lane.b32.xlu0 %v1904, 15
      %v1925 = vpop.permute.xlu0 %1924
      %1926 = vrot.lane.b32.xlu0 %v1905, 15
      %v1927 = vpop.permute.xlu0 %1926
      %v1928 = vsel %vm1495, %v1923, %v1925
      %v1929 = vsel %vm1495, %v1925, %v1927
      %v1932 = vsel %vm1467, %v1928, 0.0
      %v1933 = vsel %vm1468, %v1929, 0.0
      %1934 = vrot.lane.b32.xlu0 %v1903, 1
      %v1935 = vpop.permute.xlu0 %1934
      %1936 = vrot.lane.b32.xlu0 %v1904, 1
      %v1937 = vpop.permute.xlu0 %1936
      %1938 = vrot.lane.b32.xlu0 %v1905, 1
      %v1939 = vpop.permute.xlu0 %1938
      %v1940 = vsel %vm1508, %v1935, %v1937
      %v1941 = vsel %vm1508, %v1937, %v1939
      %v1944 = vsel %vm1465, %v1940, 0.0
      %v1945 = vsel %vm1466, %v1941, 0.0
      %1947 = vrot.lane.b32.xlu0 %v1904, 127
      %v1948 = vpop.permute.xlu0 %1947
      %1949 = vrot.lane.b32.xlu0 %v1905, 127
      %v1950 = vpop.permute.xlu0 %1949
      %1951 = vrot.lane.b32.xlu0 %v1906, 127
      %v1952 = vpop.permute.xlu0 %1951
      %v1953 = vsel %vm1522, %v1948, %v1950
      %v1954 = vsel %vm1522, %v1950, %v1952
      %v1957 = vsel %vm1467, %v1953, 0.0
      %v1958 = vsel %vm1468, %v1954, 0.0
      %1959 = vrot.lane.b32.xlu0 %v1904, 113
      %v1960 = vpop.permute.xlu0 %1959
      %1961 = vrot.lane.b32.xlu0 %v1905, 113
      %v1962 = vpop.permute.xlu0 %1961
      %1963 = vrot.lane.b32.xlu0 %v1906, 113
      %v1964 = vpop.permute.xlu0 %1963
      %v1965 = vsel %vm1535, %v1960, %v1962
      %v1966 = vsel %vm1535, %v1962, %v1964
      %v1969 = vsel %vm1465, %v1965, 0.0
      %v1970 = vsel %vm1466, %v1966, 0.0
      %1971 = vrot.lane.b32.xlu0 %v1904, 111
      %v1972 = vpop.permute.xlu0 %1971
      %1973 = vrot.lane.b32.xlu0 %v1905, 111
      %v1974 = vpop.permute.xlu0 %1973
      %1975 = vrot.lane.b32.xlu0 %v1906, 111
      %v1976 = vpop.permute.xlu0 %1975
      %v1977 = vsel %vm1548, %v1972, %v1974
      %v1978 = vsel %vm1548, %v1974, %v1976
      %v1981 = vsel %vm1467, %v1977, 0.0
      %v1982 = vsel %vm1468, %v1978, 0.0
      %1983 = vrot.lane.b32.xlu0 %v1903, 16
      %v1984 = vpop.permute.xlu0 %1983
      %1985 = vrot.lane.b32.xlu0 %v1904, 16
      %v1986 = vpop.permute.xlu0 %1985
      %1987 = vrot.lane.b32.xlu0 %v1905, 16
      %v1988 = vpop.permute.xlu0 %1987
      %v1989 = vsel %vm1561, %v1984, %v1986
      %v1990 = vsel %vm1561, %v1986, %v1988
      %1993 = vrot.lane.b32.xlu0 %v1904, 112
      %v1994 = vpop.permute.xlu0 %1993
      %1995 = vrot.lane.b32.xlu0 %v1905, 112
      %v1996 = vpop.permute.xlu0 %1995
      %1997 = vrot.lane.b32.xlu0 %v1906, 112
      %v1998 = vpop.permute.xlu0 %1997
      %v1999 = vsel %vm1572, %v1994, %v1996
      %v2000 = vsel %vm1572, %v1996, %v1998
      %v2003 = vld [vmem:[%s12] sm:$0xff]
      %v2004 = vld [vmem:[%s13] sm:$0xff]
      %2006 = vset.pattern.permute.xlu0 0
      %2007 = vperm.xlu0 %2006, %v2004
      %v2008 = vpop.permute.xlu0 %2007
      %v2011 = vsel %vm1584, %v2003, 0
      %2013 = vmatprep.subr.mxu0 %v1921
      %2014 = vmatpush1.msra.mxu0 %v1920
      %2015 = vmatprep.subr.mxu0 %v1990
      %2016 = vmatpush1.msra.mxu0 %v1989
      %2017 = vmatprep.subr.mxu0 %v1933
      %2018 = vmatpush1.msra.mxu0 %v1932
      %2019 = vmatprep.subr.mxu0 %v1945
      %2020 = vmatpush1.msra.mxu0 %v1944
      %2021 = vmatprep.subr.mxu0 %v1905
      %2022 = vmatpush1.msra.mxu0 %v1904
      %2023 = vmatprep.subr.mxu0 %v1958
      %2024 = vmatpush1.msra.mxu0 %v1957
      %2025 = vmatprep.subr.mxu0 %v1970
      %2026 = vmatpush1.msra.mxu0 %v1969
      %2027 = vmatprep.subr.mxu0 %v2000
      %2028 = vmatpush1.msra.mxu0 %v1999
      %2029 = vmatprep.subr.mxu0 %v1982
      %2030 = vmatpush1.msra.mxu0 %v1981
      %2031 = vmatprep.subr.mxu0 0.0
      %2032 = vmatpush1.msra.mxu0 0.0
      %2033 = vmatprep.subr.mxu0 0.0
      %2034 = vmatpush1.msra.mxu0 0.0
      %2035 = vmatprep.subr.mxu0 0.0
      %2036 = vmatpush1.msra.mxu0 0.0
      %2037 = vmatprep.subr.mxu0 0.0
      %2038 = vmatpush1.msra.mxu0 0.0
      %2039 = vmatprep.subr.mxu0 0.0
      %2040 = vmatpush1.msra.mxu0 0.0
      %2041 = vmatprep.subr.mxu0 0.0
      %2042 = vmatpush1.msra.mxu0 0.0
      %2043 = vmatprep.subr.mxu0 0.0
      %2044 = vmatpush1.msra.mxu0 0.0
      %2045 = vmatprep.subr.mxu0 0.0
      %2046 = vmatpush1.msra.mxu0 0.0
      %2047 = vmatprep.subr.mxu0 0.0
      %2048 = vmatpush1.msra.mxu0 0.0
      %2049 = vmatprep.subr.mxu0 0.0
      %2050 = vmatpush1.msra.mxu0 0.0
      %2051 = vmatprep.subr.mxu0 0.0
      %2052 = vmatpush1.msra.mxu0 0.0
      %2053 = vmatprep.subr.mxu0 0.0
      %2054 = vmatpush1.msra.mxu0 0.0
      %2055 = vmatprep.subr.mxu0 0.0
      %2056 = vmatpush1.msra.mxu0 0.0
      %2057 = vmatprep.subr.mxu0 0.0
      %2058 = vmatpush1.msra.mxu0 0.0
      %2059 = vmatprep.subr.mxu0 0.0
      %2060 = vmatpush1.msra.mxu0 0.0
      %2061 = vmatprep.subr.mxu0 0.0
      %2062 = vmatpush1.msra.mxu0 0.0
      %2063 = vmatprep.subr.mxu0 0.0
      %2064 = vmatpush1.msra.mxu0 0.0
      %2065 = vmatprep.subr.mxu0 0.0
      %2066 = vmatpush1.msra.mxu0 0.0
      %2067 = vmatprep.subr.mxu0 0.0
      %2068 = vmatpush1.msra.mxu0 0.0
      %2069 = vmatprep.subr.mxu0 0.0
      %2070 = vmatpush1.msra.mxu0 0.0
      %2071 = vmatprep.subr.mxu0 0.0
      %2072 = vmatpush1.msra.mxu0 0.0
      %2073 = vmatprep.subr.mxu0 0.0
      %2074 = vmatpush1.msra.mxu0 0.0
      %2075 = vmatprep.subr.mxu0 0.0
      %2076 = vmatpush1.msra.mxu0 0.0
      %2077 = vmatprep.mubr.f32.mxu0 0.0
      %2078 = vmatmul.mubr.f32.gmra.mrb[0].mxu0 %v2011
      %v2079 = vpop.f32.mrb[0].mxu0
      %v2080 = vadd.f32 %v2008, %v2079
      %v2081 = vpop.f32.mrb[0].mxu0
      %v2082 = vadd.f32 %v2008, %v2081
      %2083 = vdwg.mxu0
      %v2084 = vadd.f32 %v2080, %v2082
      %2085 = vadd.xlane.f32.xlu0 %v2084
      %v2086 = vpop.xlane.xlu0 %2085
      %v2087 = vmul.f32 %v2086, %v1662
      %v2088 = vsub.f32 %v2080, %v2087
      %v2089 = vsub.f32 %v2082, %v2087
      %v2090 = vmul.f32 %v2088, %v2088
      %v2091 = vmul.f32 %v2089, %v2089
      %v2092 = vadd.f32 %v2090, %v2091
      %2093 = vadd.xlane.f32.xlu0 %v2092
      %v2094 = vpop.xlane.xlu0 %2093
      %v2095 = vmul.f32 %v2094, %v1662
      %v2096 = vadd.f32 %v2095, 1e-05
      %v2097 = vrsqrt.pop %v2096
      %v2098 = vmul.f32 %v1429, %v2097
      %2100 = vset.pattern.permute.xlu0 0
      %2101 = vperm.xlu0 %2100, %v2098
      %v2102 = vpop.permute.xlu0 %2101
      %v2104 = vmul.f32 %v2088, %v2102
      %v2105 = vmul.f32 %v2089, %v2102
      %2107 = vset.pattern.permute.xlu0 0
      %2108 = vperm.xlu0 %2107, %v1428
      %v2109 = vpop.permute.xlu0 %2108
      %v2111 = vadd.f32 %v2104, %v2109
      %v2112 = vadd.f32 %v2105, %v2109
      %2113 = vst [vmem:[#allocation2 + $0x8] sm:$0xff] %v2111
      %2114 = vst [vmem:[#allocation2 + $0x10] sm:$0xff] %v2112
      %v2115 = vld [vmem:[#allocation2] sm:$0xff]
      %v2116 = vld [vmem:[#allocation2 + $0x8] sm:$0xff]
      %v2117 = vld [vmem:[#allocation2 + $0x10] sm:$0xff]
      %v2118 = vld [vmem:[#allocation2 + $0x18] sm:$0xff]
      %2122 = vrot.lane.b32.xlu0 %v2115, 17
      %v2123 = vpop.permute.xlu0 %2122
      %2124 = vrot.lane.b32.xlu0 %v2116, 17
      %v2125 = vpop.permute.xlu0 %2124
      %2126 = vrot.lane.b32.xlu0 %v2117, 17
      %v2127 = vpop.permute.xlu0 %2126
      %v2128 = vsel %vm1482, %v2123, %v2125
      %v2129 = vsel %vm1482, %v2125, %v2127
      %v2132 = vsel %vm1465, %v2128, 0.0
      %v2133 = vsel %vm1466, %v2129, 0.0
      %2134 = vrot.lane.b32.xlu0 %v2115, 15
      %v2135 = vpop.permute.xlu0 %2134
      %2136 = vrot.lane.b32.xlu0 %v2116, 15
      %v2137 = vpop.permute.xlu0 %2136
      %2138 = vrot.lane.b32.xlu0 %v2117, 15
      %v2139 = vpop.permute.xlu0 %2138
      %v2140 = vsel %vm1495, %v2135, %v2137
      %v2141 = vsel %vm1495, %v2137, %v2139
      %v2144 = vsel %vm1467, %v2140, 0.0
      %v2145 = vsel %vm1468, %v2141, 0.0
      %2146 = vrot.lane.b32.xlu0 %v2115, 1
      %v2147 = vpop.permute.xlu0 %2146
      %2148 = vrot.lane.b32.xlu0 %v2116, 1
      %v2149 = vpop.permute.xlu0 %2148
      %2150 = vrot.lane.b32.xlu0 %v2117, 1
      %v2151 = vpop.permute.xlu0 %2150
      %v2152 = vsel %vm1508, %v2147, %v2149
      %v2153 = vsel %vm1508, %v2149, %v2151
      %v2156 = vsel %vm1465, %v2152, 0.0
      %v2157 = vsel %vm1466, %v2153, 0.0
      %2159 = vrot.lane.b32.xlu0 %v2116, 127
      %v2160 = vpop.permute.xlu0 %2159
      %2161 = vrot.lane.b32.xlu0 %v2117, 127
      %v2162 = vpop.permute.xlu0 %2161
      %2163 = vrot.lane.b32.xlu0 %v2118, 127
      %v2164 = vpop.permute.xlu0 %2163
      %v2165 = vsel %vm1522, %v2160, %v2162
      %v2166 = vsel %vm1522, %v2162, %v2164
      %v2169 = vsel %vm1467, %v2165, 0.0
      %v2170 = vsel %vm1468, %v2166, 0.0
      %2171 = vrot.lane.b32.xlu0 %v2116, 113
      %v2172 = vpop.permute.xlu0 %2171
      %2173 = vrot.lane.b32.xlu0 %v2117, 113
      %v2174 = vpop.permute.xlu0 %2173
      %2175 = vrot.lane.b32.xlu0 %v2118, 113
      %v2176 = vpop.permute.xlu0 %2175
      %v2177 = vsel %vm1535, %v2172, %v2174
      %v2178 = vsel %vm1535, %v2174, %v2176
      %v2181 = vsel %vm1465, %v2177, 0.0
      %v2182 = vsel %vm1466, %v2178, 0.0
      %2183 = vrot.lane.b32.xlu0 %v2116, 111
      %v2184 = vpop.permute.xlu0 %2183
      %2185 = vrot.lane.b32.xlu0 %v2117, 111
      %v2186 = vpop.permute.xlu0 %2185
      %2187 = vrot.lane.b32.xlu0 %v2118, 111
      %v2188 = vpop.permute.xlu0 %2187
      %v2189 = vsel %vm1548, %v2184, %v2186
      %v2190 = vsel %vm1548, %v2186, %v2188
      %v2193 = vsel %vm1467, %v2189, 0.0
      %v2194 = vsel %vm1468, %v2190, 0.0
      %2195 = vrot.lane.b32.xlu0 %v2115, 16
      %v2196 = vpop.permute.xlu0 %2195
      %2197 = vrot.lane.b32.xlu0 %v2116, 16
      %v2198 = vpop.permute.xlu0 %2197
      %2199 = vrot.lane.b32.xlu0 %v2117, 16
      %v2200 = vpop.permute.xlu0 %2199
      %v2201 = vsel %vm1561, %v2196, %v2198
      %v2202 = vsel %vm1561, %v2198, %v2200
      %2205 = vrot.lane.b32.xlu0 %v2116, 112
      %v2206 = vpop.permute.xlu0 %2205
      %2207 = vrot.lane.b32.xlu0 %v2117, 112
      %v2208 = vpop.permute.xlu0 %2207
      %2209 = vrot.lane.b32.xlu0 %v2118, 112
      %v2210 = vpop.permute.xlu0 %2209
      %v2211 = vsel %vm1572, %v2206, %v2208
      %v2212 = vsel %vm1572, %v2208, %v2210
      %v2215 = vld [vmem:[%s14] sm:$0x7]
      %v2216 = vld [vmem:[%s15] sm:$0x7]
      %2218 = vset.pattern.permute.xlu0 0
      %2219 = vperm.xlu0 %2218, %v2216
      %v2220 = vpop.permute.xlu0 %2219
      %v2223 = vsel %vm1584, %v2215, 0
      %2225 = vmatprep.subr.mxu0 %v2133
      %2226 = vmatpush1.msra.mxu0 %v2132
      %2227 = vmatprep.subr.mxu0 %v2202
      %2228 = vmatpush1.msra.mxu0 %v2201
      %2229 = vmatprep.subr.mxu0 %v2145
      %2230 = vmatpush1.msra.mxu0 %v2144
      %2231 = vmatprep.subr.mxu0 %v2157
      %2232 = vmatpush1.msra.mxu0 %v2156
      %2233 = vmatprep.subr.mxu0 %v2117
      %2234 = vmatpush1.msra.mxu0 %v2116
      %2235 = vmatprep.subr.mxu0 %v2170
      %2236 = vmatpush1.msra.mxu0 %v2169
      %2237 = vmatprep.subr.mxu0 %v2182
      %2238 = vmatpush1.msra.mxu0 %v2181
      %2239 = vmatprep.subr.mxu0 %v2212
      %2240 = vmatpush1.msra.mxu0 %v2211
      %2241 = vmatprep.subr.mxu0 %v2194
      %2242 = vmatpush1.msra.mxu0 %v2193
      %2243 = vmatprep.subr.mxu0 0.0
      %2244 = vmatpush1.msra.mxu0 0.0
      %2245 = vmatprep.subr.mxu0 0.0
      %2246 = vmatpush1.msra.mxu0 0.0
      %2247 = vmatprep.subr.mxu0 0.0
      %2248 = vmatpush1.msra.mxu0 0.0
      %2249 = vmatprep.subr.mxu0 0.0
      %2250 = vmatpush1.msra.mxu0 0.0
      %2251 = vmatprep.subr.mxu0 0.0
      %2252 = vmatpush1.msra.mxu0 0.0
      %2253 = vmatprep.subr.mxu0 0.0
      %2254 = vmatpush1.msra.mxu0 0.0
      %2255 = vmatprep.subr.mxu0 0.0
      %2256 = vmatpush1.msra.mxu0 0.0
      %2257 = vmatprep.subr.mxu0 0.0
      %2258 = vmatpush1.msra.mxu0 0.0
      %2259 = vmatprep.subr.mxu0 0.0
      %2260 = vmatpush1.msra.mxu0 0.0
      %2261 = vmatprep.subr.mxu0 0.0
      %2262 = vmatpush1.msra.mxu0 0.0
      %2263 = vmatprep.subr.mxu0 0.0
      %2264 = vmatpush1.msra.mxu0 0.0
      %2265 = vmatprep.subr.mxu0 0.0
      %2266 = vmatpush1.msra.mxu0 0.0
      %2267 = vmatprep.subr.mxu0 0.0
      %2268 = vmatpush1.msra.mxu0 0.0
      %2269 = vmatprep.subr.mxu0 0.0
      %2270 = vmatpush1.msra.mxu0 0.0
      %2271 = vmatprep.subr.mxu0 0.0
      %2272 = vmatpush1.msra.mxu0 0.0
      %2273 = vmatprep.subr.mxu0 0.0
      %2274 = vmatpush1.msra.mxu0 0.0
      %2275 = vmatprep.subr.mxu0 0.0
      %2276 = vmatpush1.msra.mxu0 0.0
      %2277 = vmatprep.subr.mxu0 0.0
      %2278 = vmatpush1.msra.mxu0 0.0
      %2279 = vmatprep.subr.mxu0 0.0
      %2280 = vmatpush1.msra.mxu0 0.0
      %2281 = vmatprep.subr.mxu0 0.0
      %2282 = vmatpush1.msra.mxu0 0.0
      %2283 = vmatprep.subr.mxu0 0.0
      %2284 = vmatpush1.msra.mxu0 0.0
      %2285 = vmatprep.subr.mxu0 0.0
      %2286 = vmatpush1.msra.mxu0 0.0
      %2287 = vmatprep.subr.mxu0 0.0
      %2288 = vmatpush1.msra.mxu0 0.0
      %2289 = vmatprep.mubr.f32.mxu0 0.0
      %2290 = vmatmul.mubr.f32.gmra.mrb[0].mxu0 %v2223
      %v2291 = vpop.f32.mrb[0].mxu0
      %v2292 = vadd.f32 %v2220, %v2291
      %v2293 = vpop.f32.mrb[0].mxu0
      %v2294 = vadd.f32 %v2220, %v2293
      %2295 = vdwg.mxu0
      %v2296 = vtanh.pop %v2292
      %v2297 = vtanh.pop %v2294
      %v2300 = vcombine.low %v2296, %v2297
      %2302 = vst [vmem:[%s538] sm:$0x77] %v2300
      %p2303 = scmp.lt.s32.totalorder %s27, 1
      %s2304 = scalar_select %p2303, %s27, 1
      %s2305 = smul.addr %s2304, 2
      %s2306 = smul.addr %s2305, 4
      %s2307 = scalar_lea.vmem %s16, %s2306
      // Predicated region
      $region85: #{ada_decoder_forward.1} parent=83 // pred_check
        %p2308 = pneg %p391
      $region86: #{ada_decoder_forward.1} parent=83 // pred_check_branch
        %2310 = sbr.rel (%p2308) target = $region88
      $region87: #{ada_decoder_forward.1} parent=83 // pred_region
        _
      $region88: #{ada_decoder_forward.1} parent=83 // pred_fallthru
        _
    $region84: #{ada_decoder_forward.1} parent=5 // pred_fallthru
      _
    %p2311 = scmp.le.s32.totalorder 2, %s22
    // Predicated region
    $region89: #{ada_decoder_forward.1} parent=5 // pred_check
      %p2312 = pneg %p2311
    $region90: #{ada_decoder_forward.1} parent=5 // pred_check_branch
      %2314 = sbr.rel (%p2312) target = $region92
    $region91: #{ada_decoder_forward.1} parent=5 // pred_region
      %s2315 = ssub.s32 %s22, 2
      // Predicated region
      $region93: #{ada_decoder_forward.1} parent=91 // pred_check
        %p2316 = pneg %p397
      $region94: #{ada_decoder_forward.1} parent=91 // pred_check_branch
        %2318 = sbr.rel (%p2316) target = $region96
      $region95: #{ada_decoder_forward.1} parent=91 // pred_region
        %p2319 = scmp.lt.s32.totalorder %s28, 1
        %s2320 = scalar_select %p2319, %s28, 1
        %s2321 = smul.addr %s2320, 2
        %s2322 = smul.addr %s2321, 4
        %s2323 = scalar_lea.vmem %s16, %s2322
      $region96: #{ada_decoder_forward.1} parent=91 // pred_fallthru
        _
    $region92: #{ada_decoder_forward.1} parent=5 // pred_fallthru
      _
  $region6: #{ada_decoder_forward.1} parent=0 // loop_footer
    %s26 = sadd.s32 1, %s22
  $region7: #{ada_decoder_forward.1} parent=0 // loop_footer_branch
    %21 = sbr.rel target = $region3
  $region8: #{ada_decoder_forward.1} parent=0 // loop_exit
    _

</llo_original>
